<compile_context>
chip_gen: v5e
topology: v5e:2x2
jax: 0.10.0
libtpu: 0.0.40
codegen_flags: <defaults>
</compile_context>

<pallas_src>
import jax
import jax.numpy as jnp
from jax.experimental import pallas as pl
from jax.experimental.pallas import tpu as pltpu


def _round_up(x, m):
    return (x + m - 1) // m * m


def _elu(x):
    # F.elu(alpha=1.0); clamp the exp argument for hygiene (select keeps it correct).
    return jnp.where(x > 0, x, jnp.exp(jnp.minimum(x, 0.0)) - 1.0)


def _softmax_last(x):
    m = jnp.max(x, axis=-1, keepdims=True)
    e = jnp.exp(x - m)
    s = jnp.sum(e, axis=-1, keepdims=True)
    return e * pl.reciprocal(s, approx=False)


def _make_kernel(hard: bool, tau: float, thre: float, op_num: int, n_out: int):
    inv_tau = 1.0 / float(tau)

    def compute(word_ref, g_ref, hop_ref, w1w_ref, w2_ref, b2_ref, w3_ref, b3_ref,
                edges_ref, prob_ref):
        f32 = jnp.float32
        cdt = w2_ref.dtype  # matmul operand dtype (f32 or bf16); accumulation is f32
        # fc1 (word half).  hop_ref already holds op @ W1[Dw:] + b1 in f32.
        hw = jnp.dot(word_ref[...], w1w_ref[...], preferred_element_type=f32)
        hop = hop_ref[...]
        for o in range(op_num):           # op_num is a small static constant
            h1 = _elu(hw + hop[o:o + 1, :])
            h2 = _elu(jnp.dot(h1.astype(cdt), w2_ref[...],
                              preferred_element_type=f32) + b2_ref[...])
            logits = jnp.dot(h2.astype(cdt), w3_ref[...],
                             preferred_element_type=f32) + b3_ref[...]
            prob = _softmax_last(logits)
            sl = slice(o * n_out, (o + 1) * n_out)
            prob_ref[:, sl] = prob.astype(prob_ref.dtype)
            if hard:
                # ww_edges = (prob > thre).float()
                edges_ref[:, sl] = (prob > thre).astype(edges_ref.dtype)
            else:
                # ww_edges = softmax((logits + gumbel_noise) / tau, dim=-1)
                y = (logits + g_ref[:, sl]) * inv_tau
                edges_ref[:, sl] = _softmax_last(y).astype(edges_ref.dtype)

    if hard:
        # Hard mode: no gumbel input at all.
        def kernel(word_ref, hop_ref, w1w_ref, w2_ref, b2_ref, w3_ref, b3_ref,
                   edges_ref, prob_ref):
            compute(word_ref, None, hop_ref, w1w_ref, w2_ref, b2_ref, w3_ref, b3_ref,
                    edges_ref, prob_ref)
        return kernel
    return compute


def _know_pallas(word2d, gumbel2d, op_inputs, params, *, hard, tau, thre,
                 tr_max=512, compute_dtype=jnp.float32):
    """word2d: (B*S, Dw) ; gumbel2d: (B*S, O*n_out) or None (hard mode).
    Returns (edges, prob), each (B*S, O*n_out) float32."""
    N, Dw = word2d.shape
    O, Do = op_inputs.shape
    w1 = params["w1"]
    n_in, n_hid = w1.shape
    n_out = params["w3"].shape[1]
    assert n_in == Dw + Do

    # fc1 split: word part stays in the kernel; tiny op part (+ b1) precomputed once.
    w1w = w1[:Dw].astype(compute_dtype)                                   # (Dw, n_hid)
    hop = (op_inputs.astype(jnp.float32) @ w1[Dw:].astype(jnp.float32)
           + params["b1"]).astype(jnp.float32)                            # (O, n_hid)
    w2 = params["w2"].astype(compute_dtype)
    w3 = params["w3"].astype(compute_dtype)
    b2 = params["b2"].astype(jnp.float32)
    b3 = params["b3"].astype(jnp.float32)

    n_cols = O * n_out
    # Biggest row tile that makes sense: whole problem in one block when small,
    # otherwise 512-row tiles (per-step footprint is only a few hundred KB of VMEM).
    tr = min(int(tr_max), _round_up(N, 8))
    N_pad = _round_up(N, tr)

    word2d = word2d.astype(compute_dtype)
    if N_pad != N:
        word2d = jnp.pad(word2d, ((0, N_pad - N), (0, 0)))
        if gumbel2d is not None:
            gumbel2d = jnp.pad(gumbel2d, ((0, N_pad - N), (0, 0)))

    grid = (N_pad // tr,)
    row_in = pl.BlockSpec((tr, Dw), lambda i: (i, 0))
    row_out = pl.BlockSpec((tr, n_cols), lambda i: (i, 0))
    const = lambda shape: pl.BlockSpec(shape, lambda i: (0, 0))

    kernel = _make_kernel(hard, float(tau), float(thre), O, n_out)

    in_specs = [row_in]
    args = [word2d]
    if not hard:
        in_specs.append(row_out)   # gumbel noise, same layout as the outputs
        args.append(gumbel2d)
    in_specs += [const((O, n_hid)), const((Dw, n_hid)), const((n_hid, n_hid)),
                 const((1, n_hid)), const((n_hid, n_out)), const((1, n_out))]
    args += [hop, w1w, w2, b2, w3, b3]

    edges, prob = pl.pallas_call(
        kernel,
        out_shape=(
            jax.ShapeDtypeStruct((N_pad, n_cols), jnp.float32),
            jax.ShapeDtypeStruct((N_pad, n_cols), jnp.float32),
        ),
        grid_spec=pltpu.PrefetchScalarGridSpec(
            num_scalar_prefetch=0,
            grid=grid,
            in_specs=in_specs,
            out_specs=[row_out, row_out],
        ),
        compiler_params=pltpu.CompilerParams(
            dimension_semantics=("parallel",),
            vmem_limit_bytes=32 * 1024 * 1024,
        ),
    )(*args)
    return edges[:N], prob[:N]


def know_encoder1_forward(word_inputs, op_inputs, params, temp, hard, thre, noise_key,
                          *, compute_dtype=jnp.float32, tr_max=512):
    """Mirrors KnowEncoder1.forward(word_inputs, op_inputs, temp, hard, thre)."""
    B, S, Dw = word_inputs.shape
    O, Do = op_inputs.shape
    n_out = params["w3"].shape[1]
    N = B * S

    word2d = word_inputs.reshape(N, Dw).astype(jnp.float32)

    if hard:
        gumbel2d = None   # no RNG pass and no noise stream in hard mode
    else:
        # sample_gumbel: -log(eps - log(U + eps))   (exactly as in the PyTorch code)
        eps = 1e-10
        U = jax.random.uniform(noise_key, (B, S, O, n_out), dtype=jnp.float32)
        gumbel2d = (-jnp.log(eps - jnp.log(U + eps))).reshape(N, O * n_out)

    edges2d, prob2d = _know_pallas(
        word2d, gumbel2d, op_inputs, params,
        hard=hard, tau=temp, thre=thre, tr_max=tr_max, compute_dtype=compute_dtype,
    )
    return edges2d.reshape(B, S, O, n_out), prob2d.reshape(B, S, O, n_out)


def init_params(key, n_in, n_hid, n_out):
    """xavier_normal_ weights, biases filled with 0.1 (as in init_weights)."""
    k1, k2, k3 = jax.random.split(key, 3)

    def xavier(k, fan_in, fan_out):
        std = (2.0 / (fan_in + fan_out)) ** 0.5
        # stored as (in, out): kernel computes x @ W
        return jax.random.normal(k, (fan_in, fan_out), dtype=jnp.float32) * std

    return {
        "w1": xavier(k1, n_in, n_hid),
        "b1": jnp.full((1, n_hid), 0.1, dtype=jnp.float32),
        "w2": xavier(k2, n_hid, n_hid),
        "b2": jnp.full((1, n_hid), 0.1, dtype=jnp.float32),
        "w3": xavier(k3, n_hid, n_out),
        "b3": jnp.full((1, n_out), 0.1, dtype=jnp.float32),
    }


def _reference(word_inputs, op_inputs, params, temp, hard, thre, noise_key):
    """Pure-JAX reference of the same forward for a correctness check."""
    B, S, Dw = word_inputs.shape
    O, Do = op_inputs.shape
    w_rep = jnp.broadcast_to(word_inputs[:, :, None, :], (B, S, O, Dw))
    o_rep = jnp.broadcast_to(op_inputs[None, None, :, :], (B, S, O, Do))
    x = jnp.concatenate([w_rep, o_rep], axis=-1)
    h = jax.nn.elu(x @ params["w1"] + params["b1"][0])
    h = jax.nn.elu(h @ params["w2"] + params["b2"][0])
    logits = h @ params["w3"] + params["b3"][0]
    prob = jax.nn.softmax(logits, axis=-1)
    n_out = params["w3"].shape[1]
    eps = 1e-10
    U = jax.random.uniform(noise_key, (B, S, O, n_out), dtype=jnp.float32)
    g = -jnp.log(eps - jnp.log(U + eps))
    if hard:
        edges = (prob > thre).astype(jnp.float32)
    else:
        edges = jax.nn.softmax((logits + g) / temp, axis=-1)
    return edges, prob


if __name__ == "__main__":
    # Small shapes consistent with the module's forward:
    #   word_inputs: (batch, seq_len, n_word_feat), op_inputs: (op_num, n_op_feat)
    B, S, O = 2, 8, 4
    Dw, Do = 16, 16
    n_in, n_hid, n_out = Dw + Do, 32, 8
    temp, thre = 0.5, 0.5

    root = jax.random.PRNGKey(0)
    kp, kw, ko, kn = jax.random.split(root, 4)

    params = init_params(kp, n_in, n_hid, n_out)
    word_inputs = jax.random.normal(kw, (B, S, Dw), dtype=jnp.float32)
    op_inputs = jax.random.normal(ko, (O, Do), dtype=jnp.float32)

    # soft branch (gumbel-softmax edges)
    edges_soft, prob_soft = know_encoder1_forward(
        word_inputs, op_inputs, params, temp, hard=False, thre=thre, noise_key=kn
    )
    # hard branch (thresholded prob edges; kernel variant with no noise stream)
    edges_hard, prob_hard = know_encoder1_forward(
        word_inputs, op_inputs, params, temp, hard=True, thre=thre, noise_key=kn
    )
    jax.block_until_ready((edges_soft, prob_soft, edges_hard, prob_hard))

    # sanity check against a pure-JAX reference (f32 path, strict)
    ref_e_s, ref_p_s = _reference(word_inputs, op_inputs, params, temp, False, thre, kn)
    ref_e_h, ref_p_h = _reference(word_inputs, op_inputs, params, temp, True, thre, kn)
    assert jnp.allclose(prob_soft, ref_p_s, atol=1e-5, rtol=1e-5)
    assert jnp.allclose(edges_soft, ref_e_s, atol=1e-5, rtol=1e-5)
    assert jnp.allclose(prob_hard, ref_p_h, atol=1e-5, rtol=1e-5)
    assert jnp.allclose(edges_hard, ref_e_h, atol=1e-5, rtol=1e-5)

    # optional bf16 input/weight path (v6e/v7x MXU-friendly); epilogue stays f32.
    e_bf, p_bf = know_encoder1_forward(
        word_inputs, op_inputs, params, temp, hard=True, thre=thre, noise_key=kn,
        compute_dtype=jnp.bfloat16,
    )
    jax.block_until_ready((e_bf, p_bf))
    assert jnp.allclose(p_bf, ref_p_h, atol=1e-1, rtol=1e-1)  # loose: bf16 inputs

    print("KERNEL_OK")
</pallas_src>

<mosaic_0001>
module attributes {stable_mosaic.version = 11 : i64} {
  func.func @compute(%arg0: i32, %arg1: memref<16x16xf32, #tpu.memory_space<vmem>>, %arg2: memref<16x32xf32, #tpu.memory_space<vmem>>, %arg3: memref<4x32xf32, #tpu.memory_space<vmem>>, %arg4: memref<16x32xf32, #tpu.memory_space<vmem>>, %arg5: memref<32x32xf32, #tpu.memory_space<vmem>>, %arg6: memref<1x32xf32, #tpu.memory_space<vmem>>, %arg7: memref<32x8xf32, #tpu.memory_space<vmem>>, %arg8: memref<1x8xf32, #tpu.memory_space<vmem>>, %arg9: memref<16x32xf32, #tpu.memory_space<vmem>>, %arg10: memref<16x32xf32, #tpu.memory_space<vmem>>) attributes {dimension_semantics = [#tpu.dimension_semantics<parallel>], iteration_bounds = array<i64: 1>, scalar_prefetch = 0 : i64, scratch_operands = 0 : i64, tpu.core_type = #tpu.core_type<tc>, window_params = [{transform_indices = @transform_0, window_bounds = array<i64: 16, 16>}, {transform_indices = @transform_1, window_bounds = array<i64: 16, 32>}, {pipeline_mode = #tpu.pipeline_mode<synchronous>, transform_indices = @transform_2, window_bounds = array<i64: 4, 32>}, {pipeline_mode = #tpu.pipeline_mode<synchronous>, transform_indices = @transform_3, window_bounds = array<i64: 16, 32>}, {pipeline_mode = #tpu.pipeline_mode<synchronous>, transform_indices = @transform_4, window_bounds = array<i64: 32, 32>}, {pipeline_mode = #tpu.pipeline_mode<synchronous>, transform_indices = @transform_5, window_bounds = array<i64: 1, 32>}, {pipeline_mode = #tpu.pipeline_mode<synchronous>, transform_indices = @transform_6, window_bounds = array<i64: 32, 8>}, {pipeline_mode = #tpu.pipeline_mode<synchronous>, transform_indices = @transform_7, window_bounds = array<i64: 1, 8>}, {transform_indices = @transform_8, window_bounds = array<i64: 16, 32>}, {transform_indices = @transform_9, window_bounds = array<i64: 16, 32>}]} {
    %c0 = arith.constant 0 : index
    %c0_0 = arith.constant 0 : index
    %0 = vector.load %arg1[%c0, %c0_0] : memref<16x16xf32, #tpu.memory_space<vmem>>, vector<16x16xf32>
    %c0_1 = arith.constant 0 : index
    %c0_2 = arith.constant 0 : index
    %1 = vector.load %arg4[%c0_1, %c0_2] : memref<16x32xf32, #tpu.memory_space<vmem>>, vector<16x32xf32>
    %cst = arith.constant dense<0.000000e+00> : vector<16x32xf32>
    %2 = tpu.matmul %0, %1, %cst {dimension_numbers = #tpu.dot_dimension_numbers<[1], [0], [0], [1], [0, 0, 1, 1], [], []>} : vector<16x16xf32>, vector<16x32xf32>, vector<16x32xf32> -> vector<16x32xf32>
    %c0_3 = arith.constant 0 : index
    %c0_4 = arith.constant 0 : index
    %3 = vector.load %arg3[%c0_3, %c0_4] : memref<4x32xf32, #tpu.memory_space<vmem>>, vector<4x32xf32>
    %4 = vector.extract_strided_slice %3 {offsets = [0, 0], sizes = [1, 32], strides = [1, 1]} : vector<4x32xf32> to vector<1x32xf32>
    %5 = vector.broadcast %4 : vector<1x32xf32> to vector<16x32xf32>
    %6 = arith.addf %2, %5 : vector<16x32xf32>
    %cst_5 = arith.constant 0.000000e+00 : f32
    %7 = vector.broadcast %cst_5 : f32 to vector<16x32xf32>
    %8 = arith.cmpf ogt, %6, %7 : vector<16x32xf32>
    %cst_6 = arith.constant 0.000000e+00 : f32
    %9 = vector.broadcast %cst_6 : f32 to vector<16x32xf32>
    %10 = arith.minimumf %6, %9 : vector<16x32xf32>
    %11 = math.exp %10 : vector<16x32xf32>
    %cst_7 = arith.constant 1.000000e+00 : f32
    %12 = vector.broadcast %cst_7 : f32 to vector<16x32xf32>
    %13 = arith.subf %11, %12 : vector<16x32xf32>
    %14 = arith.select %8, %6, %13 : vector<16x32xi1>, vector<16x32xf32>
    %c0_8 = arith.constant 0 : index
    %c0_9 = arith.constant 0 : index
    %15 = vector.load %arg5[%c0_8, %c0_9] : memref<32x32xf32, #tpu.memory_space<vmem>>, vector<32x32xf32>
    %cst_10 = arith.constant dense<0.000000e+00> : vector<16x32xf32>
    %16 = tpu.matmul %14, %15, %cst_10 {dimension_numbers = #tpu.dot_dimension_numbers<[1], [0], [0], [1], [0, 0, 1, 1], [], []>} : vector<16x32xf32>, vector<32x32xf32>, vector<16x32xf32> -> vector<16x32xf32>
    %c0_11 = arith.constant 0 : index
    %c0_12 = arith.constant 0 : index
    %17 = vector.load %arg6[%c0_11, %c0_12] : memref<1x32xf32, #tpu.memory_space<vmem>>, vector<1x32xf32>
    %18 = vector.broadcast %17 : vector<1x32xf32> to vector<16x32xf32>
    %19 = arith.addf %16, %18 : vector<16x32xf32>
    %cst_13 = arith.constant 0.000000e+00 : f32
    %20 = vector.broadcast %cst_13 : f32 to vector<16x32xf32>
    %21 = arith.cmpf ogt, %19, %20 : vector<16x32xf32>
    %cst_14 = arith.constant 0.000000e+00 : f32
    %22 = vector.broadcast %cst_14 : f32 to vector<16x32xf32>
    %23 = arith.minimumf %19, %22 : vector<16x32xf32>
    %24 = math.exp %23 : vector<16x32xf32>
    %cst_15 = arith.constant 1.000000e+00 : f32
    %25 = vector.broadcast %cst_15 : f32 to vector<16x32xf32>
    %26 = arith.subf %24, %25 : vector<16x32xf32>
    %27 = arith.select %21, %19, %26 : vector<16x32xi1>, vector<16x32xf32>
    %c0_16 = arith.constant 0 : index
    %c0_17 = arith.constant 0 : index
    %28 = vector.load %arg7[%c0_16, %c0_17] : memref<32x8xf32, #tpu.memory_space<vmem>>, vector<32x8xf32>
    %cst_18 = arith.constant dense<0.000000e+00> : vector<16x8xf32>
    %29 = tpu.matmul %27, %28, %cst_18 {dimension_numbers = #tpu.dot_dimension_numbers<[1], [0], [0], [1], [0, 0, 1, 1], [], []>} : vector<16x32xf32>, vector<32x8xf32>, vector<16x8xf32> -> vector<16x8xf32>
    %c0_19 = arith.constant 0 : index
    %c0_20 = arith.constant 0 : index
    %30 = vector.load %arg8[%c0_19, %c0_20] : memref<1x8xf32, #tpu.memory_space<vmem>>, vector<1x8xf32>
    %31 = vector.broadcast %30 : vector<1x8xf32> to vector<16x8xf32>
    %32 = arith.addf %29, %31 : vector<16x8xf32>
    %cst_21 = arith.constant dense<0xFF800000> : vector<16xf32>
    %33 = vector.multi_reduction <maximumf>, %32, %cst_21 [1] : vector<16x8xf32> to vector<16xf32>
    %34 = vector.shape_cast %33 : vector<16xf32> to vector<16x1xf32>
    %35 = vector.broadcast %34 : vector<16x1xf32> to vector<16x8xf32>
    %36 = arith.subf %32, %35 : vector<16x8xf32>
    %37 = math.exp %36 : vector<16x8xf32>
    %cst_22 = arith.constant dense<0.000000e+00> : vector<16xf32>
    %38 = vector.multi_reduction <add>, %37, %cst_22 [1] : vector<16x8xf32> to vector<16xf32>
    %39 = vector.shape_cast %38 : vector<16xf32> to vector<16x1xf32>
    %40 = tpu.reciprocal %39 : vector<16x1xf32> -> vector<16x1xf32>
    %41 = vector.broadcast %40 : vector<16x1xf32> to vector<16x8xf32>
    %42 = arith.mulf %37, %41 : vector<16x8xf32>
    %c0_23 = arith.constant 0 : index
    %c0_24 = arith.constant 0 : index
    %43 = vector.load %arg10[%c0_23, %c0_24] : memref<16x32xf32, #tpu.memory_space<vmem>>, vector<16x8xf32>
    tpu.vector_store %arg10[%c0_23, %c0_24], %42 {strides = array<i32>} : memref<16x32xf32, #tpu.memory_space<vmem>>, vector<16x8xf32>,
    %c0_25 = arith.constant 0 : index
    %c0_26 = arith.constant 0 : index
    %44 = vector.load %arg2[%c0_25, %c0_26] : memref<16x32xf32, #tpu.memory_space<vmem>>, vector<16x8xf32>
    %45 = arith.addf %32, %44 : vector<16x8xf32>
    %cst_27 = arith.constant 2.000000e+00 : f32
    %46 = vector.broadcast %cst_27 : f32 to vector<16x8xf32>
    %47 = arith.mulf %45, %46 : vector<16x8xf32>
    %cst_28 = arith.constant dense<0xFF800000> : vector<16xf32>
    %48 = vector.multi_reduction <maximumf>, %47, %cst_28 [1] : vector<16x8xf32> to vector<16xf32>
    %49 = vector.shape_cast %48 : vector<16xf32> to vector<16x1xf32>
    %50 = vector.broadcast %49 : vector<16x1xf32> to vector<16x8xf32>
    %51 = arith.subf %47, %50 : vector<16x8xf32>
    %52 = math.exp %51 : vector<16x8xf32>
    %cst_29 = arith.constant dense<0.000000e+00> : vector<16xf32>
    %53 = vector.multi_reduction <add>, %52, %cst_29 [1] : vector<16x8xf32> to vector<16xf32>
    %54 = vector.shape_cast %53 : vector<16xf32> to vector<16x1xf32>
    %55 = tpu.reciprocal %54 : vector<16x1xf32> -> vector<16x1xf32>
    %56 = vector.broadcast %55 : vector<16x1xf32> to vector<16x8xf32>
    %57 = arith.mulf %52, %56 : vector<16x8xf32>
    %c0_30 = arith.constant 0 : index
    %c0_31 = arith.constant 0 : index
    %58 = vector.load %arg9[%c0_30, %c0_31] : memref<16x32xf32, #tpu.memory_space<vmem>>, vector<16x8xf32>
    tpu.vector_store %arg9[%c0_30, %c0_31], %57 {strides = array<i32>} : memref<16x32xf32, #tpu.memory_space<vmem>>, vector<16x8xf32>,
    %59 = vector.extract_strided_slice %3 {offsets = [1, 0], sizes = [1, 32], strides = [1, 1]} : vector<4x32xf32> to vector<1x32xf32>
    %60 = vector.broadcast %59 : vector<1x32xf32> to vector<16x32xf32>
    %61 = arith.addf %2, %60 : vector<16x32xf32>
    %cst_32 = arith.constant 0.000000e+00 : f32
    %62 = vector.broadcast %cst_32 : f32 to vector<16x32xf32>
    %63 = arith.cmpf ogt, %61, %62 : vector<16x32xf32>
    %cst_33 = arith.constant 0.000000e+00 : f32
    %64 = vector.broadcast %cst_33 : f32 to vector<16x32xf32>
    %65 = arith.minimumf %61, %64 : vector<16x32xf32>
    %66 = math.exp %65 : vector<16x32xf32>
    %cst_34 = arith.constant 1.000000e+00 : f32
    %67 = vector.broadcast %cst_34 : f32 to vector<16x32xf32>
    %68 = arith.subf %66, %67 : vector<16x32xf32>
    %69 = arith.select %63, %61, %68 : vector<16x32xi1>, vector<16x32xf32>
    %c0_35 = arith.constant 0 : index
    %c0_36 = arith.constant 0 : index
    %70 = vector.load %arg5[%c0_35, %c0_36] : memref<32x32xf32, #tpu.memory_space<vmem>>, vector<32x32xf32>
    %cst_37 = arith.constant dense<0.000000e+00> : vector<16x32xf32>
    %71 = tpu.matmul %69, %70, %cst_37 {dimension_numbers = #tpu.dot_dimension_numbers<[1], [0], [0], [1], [0, 0, 1, 1], [], []>} : vector<16x32xf32>, vector<32x32xf32>, vector<16x32xf32> -> vector<16x32xf32>
    %c0_38 = arith.constant 0 : index
    %c0_39 = arith.constant 0 : index
    %72 = vector.load %arg6[%c0_38, %c0_39] : memref<1x32xf32, #tpu.memory_space<vmem>>, vector<1x32xf32>
    %73 = vector.broadcast %72 : vector<1x32xf32> to vector<16x32xf32>
    %74 = arith.addf %71, %73 : vector<16x32xf32>
    %cst_40 = arith.constant 0.000000e+00 : f32
    %75 = vector.broadcast %cst_40 : f32 to vector<16x32xf32>
    %76 = arith.cmpf ogt, %74, %75 : vector<16x32xf32>
    %cst_41 = arith.constant 0.000000e+00 : f32
    %77 = vector.broadcast %cst_41 : f32 to vector<16x32xf32>
    %78 = arith.minimumf %74, %77 : vector<16x32xf32>
    %79 = math.exp %78 : vector<16x32xf32>
    %cst_42 = arith.constant 1.000000e+00 : f32
    %80 = vector.broadcast %cst_42 : f32 to vector<16x32xf32>
    %81 = arith.subf %79, %80 : vector<16x32xf32>
    %82 = arith.select %76, %74, %81 : vector<16x32xi1>, vector<16x32xf32>
    %c0_43 = arith.constant 0 : index
    %c0_44 = arith.constant 0 : index
    %83 = vector.load %arg7[%c0_43, %c0_44] : memref<32x8xf32, #tpu.memory_space<vmem>>, vector<32x8xf32>
    %cst_45 = arith.constant dense<0.000000e+00> : vector<16x8xf32>
    %84 = tpu.matmul %82, %83, %cst_45 {dimension_numbers = #tpu.dot_dimension_numbers<[1], [0], [0], [1], [0, 0, 1, 1], [], []>} : vector<16x32xf32>, vector<32x8xf32>, vector<16x8xf32> -> vector<16x8xf32>
    %c0_46 = arith.constant 0 : index
    %c0_47 = arith.constant 0 : index
    %85 = vector.load %arg8[%c0_46, %c0_47] : memref<1x8xf32, #tpu.memory_space<vmem>>, vector<1x8xf32>
    %86 = vector.broadcast %85 : vector<1x8xf32> to vector<16x8xf32>
    %87 = arith.addf %84, %86 : vector<16x8xf32>
    %cst_48 = arith.constant dense<0xFF800000> : vector<16xf32>
    %88 = vector.multi_reduction <maximumf>, %87, %cst_48 [1] : vector<16x8xf32> to vector<16xf32>
    %89 = vector.shape_cast %88 : vector<16xf32> to vector<16x1xf32>
    %90 = vector.broadcast %89 : vector<16x1xf32> to vector<16x8xf32>
    %91 = arith.subf %87, %90 : vector<16x8xf32>
    %92 = math.exp %91 : vector<16x8xf32>
    %cst_49 = arith.constant dense<0.000000e+00> : vector<16xf32>
    %93 = vector.multi_reduction <add>, %92, %cst_49 [1] : vector<16x8xf32> to vector<16xf32>
    %94 = vector.shape_cast %93 : vector<16xf32> to vector<16x1xf32>
    %95 = tpu.reciprocal %94 : vector<16x1xf32> -> vector<16x1xf32>
    %96 = vector.broadcast %95 : vector<16x1xf32> to vector<16x8xf32>
    %97 = arith.mulf %92, %96 : vector<16x8xf32>
    %c0_50 = arith.constant 0 : index
    %c8 = arith.constant 8 : index
    %98 = vector.load %arg10[%c0_50, %c8] : memref<16x32xf32, #tpu.memory_space<vmem>>, vector<16x8xf32>
    tpu.vector_store %arg10[%c0_50, %c8], %97 {strides = array<i32>} : memref<16x32xf32, #tpu.memory_space<vmem>>, vector<16x8xf32>,
    %c0_51 = arith.constant 0 : index
    %c8_52 = arith.constant 8 : index
    %99 = vector.load %arg2[%c0_51, %c8_52] : memref<16x32xf32, #tpu.memory_space<vmem>>, vector<16x8xf32>
    %100 = arith.addf %87, %99 : vector<16x8xf32>
    %cst_53 = arith.constant 2.000000e+00 : f32
    %101 = vector.broadcast %cst_53 : f32 to vector<16x8xf32>
    %102 = arith.mulf %100, %101 : vector<16x8xf32>
    %cst_54 = arith.constant dense<0xFF800000> : vector<16xf32>
    %103 = vector.multi_reduction <maximumf>, %102, %cst_54 [1] : vector<16x8xf32> to vector<16xf32>
    %104 = vector.shape_cast %103 : vector<16xf32> to vector<16x1xf32>
    %105 = vector.broadcast %104 : vector<16x1xf32> to vector<16x8xf32>
    %106 = arith.subf %102, %105 : vector<16x8xf32>
    %107 = math.exp %106 : vector<16x8xf32>
    %cst_55 = arith.constant dense<0.000000e+00> : vector<16xf32>
    %108 = vector.multi_reduction <add>, %107, %cst_55 [1] : vector<16x8xf32> to vector<16xf32>
    %109 = vector.shape_cast %108 : vector<16xf32> to vector<16x1xf32>
    %110 = tpu.reciprocal %109 : vector<16x1xf32> -> vector<16x1xf32>
    %111 = vector.broadcast %110 : vector<16x1xf32> to vector<16x8xf32>
    %112 = arith.mulf %107, %111 : vector<16x8xf32>
    %c0_56 = arith.constant 0 : index
    %c8_57 = arith.constant 8 : index
    %113 = vector.load %arg9[%c0_56, %c8_57] : memref<16x32xf32, #tpu.memory_space<vmem>>, vector<16x8xf32>
    tpu.vector_store %arg9[%c0_56, %c8_57], %112 {strides = array<i32>} : memref<16x32xf32, #tpu.memory_space<vmem>>, vector<16x8xf32>,
    %114 = vector.extract_strided_slice %3 {offsets = [2, 0], sizes = [1, 32], strides = [1, 1]} : vector<4x32xf32> to vector<1x32xf32>
    %115 = vector.broadcast %114 : vector<1x32xf32> to vector<16x32xf32>
    %116 = arith.addf %2, %115 : vector<16x32xf32>
    %cst_58 = arith.constant 0.000000e+00 : f32
    %117 = vector.broadcast %cst_58 : f32 to vector<16x32xf32>
    %118 = arith.cmpf ogt, %116, %117 : vector<16x32xf32>
    %cst_59 = arith.constant 0.000000e+00 : f32
    %119 = vector.broadcast %cst_59 : f32 to vector<16x32xf32>
    %120 = arith.minimumf %116, %119 : vector<16x32xf32>
    %121 = math.exp %120 : vector<16x32xf32>
    %cst_60 = arith.constant 1.000000e+00 : f32
    %122 = vector.broadcast %cst_60 : f32 to vector<16x32xf32>
    %123 = arith.subf %121, %122 : vector<16x32xf32>
    %124 = arith.select %118, %116, %123 : vector<16x32xi1>, vector<16x32xf32>
    %c0_61 = arith.constant 0 : index
    %c0_62 = arith.constant 0 : index
    %125 = vector.load %arg5[%c0_61, %c0_62] : memref<32x32xf32, #tpu.memory_space<vmem>>, vector<32x32xf32>
    %cst_63 = arith.constant dense<0.000000e+00> : vector<16x32xf32>
    %126 = tpu.matmul %124, %125, %cst_63 {dimension_numbers = #tpu.dot_dimension_numbers<[1], [0], [0], [1], [0, 0, 1, 1], [], []>} : vector<16x32xf32>, vector<32x32xf32>, vector<16x32xf32> -> vector<16x32xf32>
    %c0_64 = arith.constant 0 : index
    %c0_65 = arith.constant 0 : index
    %127 = vector.load %arg6[%c0_64, %c0_65] : memref<1x32xf32, #tpu.memory_space<vmem>>, vector<1x32xf32>
    %128 = vector.broadcast %127 : vector<1x32xf32> to vector<16x32xf32>
    %129 = arith.addf %126, %128 : vector<16x32xf32>
    %cst_66 = arith.constant 0.000000e+00 : f32
    %130 = vector.broadcast %cst_66 : f32 to vector<16x32xf32>
    %131 = arith.cmpf ogt, %129, %130 : vector<16x32xf32>
    %cst_67 = arith.constant 0.000000e+00 : f32
    %132 = vector.broadcast %cst_67 : f32 to vector<16x32xf32>
    %133 = arith.minimumf %129, %132 : vector<16x32xf32>
    %134 = math.exp %133 : vector<16x32xf32>
    %cst_68 = arith.constant 1.000000e+00 : f32
    %135 = vector.broadcast %cst_68 : f32 to vector<16x32xf32>
    %136 = arith.subf %134, %135 : vector<16x32xf32>
    %137 = arith.select %131, %129, %136 : vector<16x32xi1>, vector<16x32xf32>
    %c0_69 = arith.constant 0 : index
    %c0_70 = arith.constant 0 : index
    %138 = vector.load %arg7[%c0_69, %c0_70] : memref<32x8xf32, #tpu.memory_space<vmem>>, vector<32x8xf32>
    %cst_71 = arith.constant dense<0.000000e+00> : vector<16x8xf32>
    %139 = tpu.matmul %137, %138, %cst_71 {dimension_numbers = #tpu.dot_dimension_numbers<[1], [0], [0], [1], [0, 0, 1, 1], [], []>} : vector<16x32xf32>, vector<32x8xf32>, vector<16x8xf32> -> vector<16x8xf32>
    %c0_72 = arith.constant 0 : index
    %c0_73 = arith.constant 0 : index
    %140 = vector.load %arg8[%c0_72, %c0_73] : memref<1x8xf32, #tpu.memory_space<vmem>>, vector<1x8xf32>
    %141 = vector.broadcast %140 : vector<1x8xf32> to vector<16x8xf32>
    %142 = arith.addf %139, %141 : vector<16x8xf32>
    %cst_74 = arith.constant dense<0xFF800000> : vector<16xf32>
    %143 = vector.multi_reduction <maximumf>, %142, %cst_74 [1] : vector<16x8xf32> to vector<16xf32>
    %144 = vector.shape_cast %143 : vector<16xf32> to vector<16x1xf32>
    %145 = vector.broadcast %144 : vector<16x1xf32> to vector<16x8xf32>
    %146 = arith.subf %142, %145 : vector<16x8xf32>
    %147 = math.exp %146 : vector<16x8xf32>
    %cst_75 = arith.constant dense<0.000000e+00> : vector<16xf32>
    %148 = vector.multi_reduction <add>, %147, %cst_75 [1] : vector<16x8xf32> to vector<16xf32>
    %149 = vector.shape_cast %148 : vector<16xf32> to vector<16x1xf32>
    %150 = tpu.reciprocal %149 : vector<16x1xf32> -> vector<16x1xf32>
    %151 = vector.broadcast %150 : vector<16x1xf32> to vector<16x8xf32>
    %152 = arith.mulf %147, %151 : vector<16x8xf32>
    %c0_76 = arith.constant 0 : index
    %c16 = arith.constant 16 : index
    %153 = vector.load %arg10[%c0_76, %c16] : memref<16x32xf32, #tpu.memory_space<vmem>>, vector<16x8xf32>
    tpu.vector_store %arg10[%c0_76, %c16], %152 {strides = array<i32>} : memref<16x32xf32, #tpu.memory_space<vmem>>, vector<16x8xf32>,
    %c0_77 = arith.constant 0 : index
    %c16_78 = arith.constant 16 : index
    %154 = vector.load %arg2[%c0_77, %c16_78] : memref<16x32xf32, #tpu.memory_space<vmem>>, vector<16x8xf32>
    %155 = arith.addf %142, %154 : vector<16x8xf32>
    %cst_79 = arith.constant 2.000000e+00 : f32
    %156 = vector.broadcast %cst_79 : f32 to vector<16x8xf32>
    %157 = arith.mulf %155, %156 : vector<16x8xf32>
    %cst_80 = arith.constant dense<0xFF800000> : vector<16xf32>
    %158 = vector.multi_reduction <maximumf>, %157, %cst_80 [1] : vector<16x8xf32> to vector<16xf32>
    %159 = vector.shape_cast %158 : vector<16xf32> to vector<16x1xf32>
    %160 = vector.broadcast %159 : vector<16x1xf32> to vector<16x8xf32>
    %161 = arith.subf %157, %160 : vector<16x8xf32>
    %162 = math.exp %161 : vector<16x8xf32>
    %cst_81 = arith.constant dense<0.000000e+00> : vector<16xf32>
    %163 = vector.multi_reduction <add>, %162, %cst_81 [1] : vector<16x8xf32> to vector<16xf32>
    %164 = vector.shape_cast %163 : vector<16xf32> to vector<16x1xf32>
    %165 = tpu.reciprocal %164 : vector<16x1xf32> -> vector<16x1xf32>
    %166 = vector.broadcast %165 : vector<16x1xf32> to vector<16x8xf32>
    %167 = arith.mulf %162, %166 : vector<16x8xf32>
    %c0_82 = arith.constant 0 : index
    %c16_83 = arith.constant 16 : index
    %168 = vector.load %arg9[%c0_82, %c16_83] : memref<16x32xf32, #tpu.memory_space<vmem>>, vector<16x8xf32>
    tpu.vector_store %arg9[%c0_82, %c16_83], %167 {strides = array<i32>} : memref<16x32xf32, #tpu.memory_space<vmem>>, vector<16x8xf32>,
    %169 = vector.extract_strided_slice %3 {offsets = [3, 0], sizes = [1, 32], strides = [1, 1]} : vector<4x32xf32> to vector<1x32xf32>
    %170 = vector.broadcast %169 : vector<1x32xf32> to vector<16x32xf32>
    %171 = arith.addf %2, %170 : vector<16x32xf32>
    %cst_84 = arith.constant 0.000000e+00 : f32
    %172 = vector.broadcast %cst_84 : f32 to vector<16x32xf32>
    %173 = arith.cmpf ogt, %171, %172 : vector<16x32xf32>
    %cst_85 = arith.constant 0.000000e+00 : f32
    %174 = vector.broadcast %cst_85 : f32 to vector<16x32xf32>
    %175 = arith.minimumf %171, %174 : vector<16x32xf32>
    %176 = math.exp %175 : vector<16x32xf32>
    %cst_86 = arith.constant 1.000000e+00 : f32
    %177 = vector.broadcast %cst_86 : f32 to vector<16x32xf32>
    %178 = arith.subf %176, %177 : vector<16x32xf32>
    %179 = arith.select %173, %171, %178 : vector<16x32xi1>, vector<16x32xf32>
    %c0_87 = arith.constant 0 : index
    %c0_88 = arith.constant 0 : index
    %180 = vector.load %arg5[%c0_87, %c0_88] : memref<32x32xf32, #tpu.memory_space<vmem>>, vector<32x32xf32>
    %cst_89 = arith.constant dense<0.000000e+00> : vector<16x32xf32>
    %181 = tpu.matmul %179, %180, %cst_89 {dimension_numbers = #tpu.dot_dimension_numbers<[1], [0], [0], [1], [0, 0, 1, 1], [], []>} : vector<16x32xf32>, vector<32x32xf32>, vector<16x32xf32> -> vector<16x32xf32>
    %c0_90 = arith.constant 0 : index
    %c0_91 = arith.constant 0 : index
    %182 = vector.load %arg6[%c0_90, %c0_91] : memref<1x32xf32, #tpu.memory_space<vmem>>, vector<1x32xf32>
    %183 = vector.broadcast %182 : vector<1x32xf32> to vector<16x32xf32>
    %184 = arith.addf %181, %183 : vector<16x32xf32>
    %cst_92 = arith.constant 0.000000e+00 : f32
    %185 = vector.broadcast %cst_92 : f32 to vector<16x32xf32>
    %186 = arith.cmpf ogt, %184, %185 : vector<16x32xf32>
    %cst_93 = arith.constant 0.000000e+00 : f32
    %187 = vector.broadcast %cst_93 : f32 to vector<16x32xf32>
    %188 = arith.minimumf %184, %187 : vector<16x32xf32>
    %189 = math.exp %188 : vector<16x32xf32>
    %cst_94 = arith.constant 1.000000e+00 : f32
    %190 = vector.broadcast %cst_94 : f32 to vector<16x32xf32>
    %191 = arith.subf %189, %190 : vector<16x32xf32>
    %192 = arith.select %186, %184, %191 : vector<16x32xi1>, vector<16x32xf32>
    %c0_95 = arith.constant 0 : index
    %c0_96 = arith.constant 0 : index
    %193 = vector.load %arg7[%c0_95, %c0_96] : memref<32x8xf32, #tpu.memory_space<vmem>>, vector<32x8xf32>
    %cst_97 = arith.constant dense<0.000000e+00> : vector<16x8xf32>
    %194 = tpu.matmul %192, %193, %cst_97 {dimension_numbers = #tpu.dot_dimension_numbers<[1], [0], [0], [1], [0, 0, 1, 1], [], []>} : vector<16x32xf32>, vector<32x8xf32>, vector<16x8xf32> -> vector<16x8xf32>
    %c0_98 = arith.constant 0 : index
    %c0_99 = arith.constant 0 : index
    %195 = vector.load %arg8[%c0_98, %c0_99] : memref<1x8xf32, #tpu.memory_space<vmem>>, vector<1x8xf32>
    %196 = vector.broadcast %195 : vector<1x8xf32> to vector<16x8xf32>
    %197 = arith.addf %194, %196 : vector<16x8xf32>
    %cst_100 = arith.constant dense<0xFF800000> : vector<16xf32>
    %198 = vector.multi_reduction <maximumf>, %197, %cst_100 [1] : vector<16x8xf32> to vector<16xf32>
    %199 = vector.shape_cast %198 : vector<16xf32> to vector<16x1xf32>
    %200 = vector.broadcast %199 : vector<16x1xf32> to vector<16x8xf32>
    %201 = arith.subf %197, %200 : vector<16x8xf32>
    %202 = math.exp %201 : vector<16x8xf32>
    %cst_101 = arith.constant dense<0.000000e+00> : vector<16xf32>
    %203 = vector.multi_reduction <add>, %202, %cst_101 [1] : vector<16x8xf32> to vector<16xf32>
    %204 = vector.shape_cast %203 : vector<16xf32> to vector<16x1xf32>
    %205 = tpu.reciprocal %204 : vector<16x1xf32> -> vector<16x1xf32>
    %206 = vector.broadcast %205 : vector<16x1xf32> to vector<16x8xf32>
    %207 = arith.mulf %202, %206 : vector<16x8xf32>
    %c0_102 = arith.constant 0 : index
    %c24 = arith.constant 24 : index
    %208 = vector.load %arg10[%c0_102, %c24] : memref<16x32xf32, #tpu.memory_space<vmem>>, vector<16x8xf32>
    tpu.vector_store %arg10[%c0_102, %c24], %207 {strides = array<i32>} : memref<16x32xf32, #tpu.memory_space<vmem>>, vector<16x8xf32>,
    %c0_103 = arith.constant 0 : index
    %c24_104 = arith.constant 24 : index
    %209 = vector.load %arg2[%c0_103, %c24_104] : memref<16x32xf32, #tpu.memory_space<vmem>>, vector<16x8xf32>
    %210 = arith.addf %197, %209 : vector<16x8xf32>
    %cst_105 = arith.constant 2.000000e+00 : f32
    %211 = vector.broadcast %cst_105 : f32 to vector<16x8xf32>
    %212 = arith.mulf %210, %211 : vector<16x8xf32>
    %cst_106 = arith.constant dense<0xFF800000> : vector<16xf32>
    %213 = vector.multi_reduction <maximumf>, %212, %cst_106 [1] : vector<16x8xf32> to vector<16xf32>
    %214 = vector.shape_cast %213 : vector<16xf32> to vector<16x1xf32>
    %215 = vector.broadcast %214 : vector<16x1xf32> to vector<16x8xf32>
    %216 = arith.subf %212, %215 : vector<16x8xf32>
    %217 = math.exp %216 : vector<16x8xf32>
    %cst_107 = arith.constant dense<0.000000e+00> : vector<16xf32>
    %218 = vector.multi_reduction <add>, %217, %cst_107 [1] : vector<16x8xf32> to vector<16xf32>
    %219 = vector.shape_cast %218 : vector<16xf32> to vector<16x1xf32>
    %220 = tpu.reciprocal %219 : vector<16x1xf32> -> vector<16x1xf32>
    %221 = vector.broadcast %220 : vector<16x1xf32> to vector<16x8xf32>
    %222 = arith.mulf %217, %221 : vector<16x8xf32>
    %c0_108 = arith.constant 0 : index
    %c24_109 = arith.constant 24 : index
    %223 = vector.load %arg9[%c0_108, %c24_109] : memref<16x32xf32, #tpu.memory_space<vmem>>, vector<16x8xf32>
    tpu.vector_store %arg9[%c0_108, %c24_109], %222 {strides = array<i32>} : memref<16x32xf32, #tpu.memory_space<vmem>>, vector<16x8xf32>,
    return
  }
  func.func @transform_0(%arg0: i32) -> (i32, i32) {
    %c0_i32 = arith.constant 0 : i32
    %c0_i32_0 = arith.constant 0 : i32
    return %arg0, %c0_i32 : i32, i32
  }
  func.func @transform_1(%arg0: i32) -> (i32, i32) {
    %c0_i32 = arith.constant 0 : i32
    %c0_i32_0 = arith.constant 0 : i32
    return %arg0, %c0_i32 : i32, i32
  }
  func.func @transform_2(%arg0: i32) -> (i32, i32) {
    %c0_i32 = arith.constant 0 : i32
    %c0_i32_0 = arith.constant 0 : i32
    %c0_i32_1 = arith.constant 0 : i32
    return %c0_i32, %c0_i32_0 : i32, i32
  }
  func.func @transform_3(%arg0: i32) -> (i32, i32) {
    %c0_i32 = arith.constant 0 : i32
    %c0_i32_0 = arith.constant 0 : i32
    %c0_i32_1 = arith.constant 0 : i32
    return %c0_i32, %c0_i32_0 : i32, i32
  }
  func.func @transform_4(%arg0: i32) -> (i32, i32) {
    %c0_i32 = arith.constant 0 : i32
    %c0_i32_0 = arith.constant 0 : i32
    %c0_i32_1 = arith.constant 0 : i32
    return %c0_i32, %c0_i32_0 : i32, i32
  }
  func.func @transform_5(%arg0: i32) -> (i32, i32) {
    %c0_i32 = arith.constant 0 : i32
    %c0_i32_0 = arith.constant 0 : i32
    %c0_i32_1 = arith.constant 0 : i32
    return %c0_i32, %c0_i32_0 : i32, i32
  }
  func.func @transform_6(%arg0: i32) -> (i32, i32) {
    %c0_i32 = arith.constant 0 : i32
    %c0_i32_0 = arith.constant 0 : i32
    %c0_i32_1 = arith.constant 0 : i32
    return %c0_i32, %c0_i32_0 : i32, i32
  }
  func.func @transform_7(%arg0: i32) -> (i32, i32) {
    %c0_i32 = arith.constant 0 : i32
    %c0_i32_0 = arith.constant 0 : i32
    %c0_i32_1 = arith.constant 0 : i32
    return %c0_i32, %c0_i32_0 : i32, i32
  }
  func.func @transform_8(%arg0: i32) -> (i32, i32) {
    %c0_i32 = arith.constant 0 : i32
    %c0_i32_0 = arith.constant 0 : i32
    return %arg0, %c0_i32 : i32, i32
  }
  func.func @transform_9(%arg0: i32) -> (i32, i32) {
    %c0_i32 = arith.constant 0 : i32
    %c0_i32_0 = arith.constant 0 : i32
    return %arg0, %c0_i32 : i32, i32
  }
}

</mosaic_0001>

<llo_original>
// kernel: tpu_custom_call.1
$region0: #{tpu_custom_call.1}
  #allocation0 [shape = 'u32[]', space=smem, size = 0x4, offset = 0x4, fixed_abs, tag = 'smem constant byte address 0x4 - core index']
  #allocation1 [shape = 'u32[72,128]{1,0:T(1,128)}', space=vmem, size = 0x9000, scoped, tag = 'internal scratch']
  %s0 = inlined_call_operand.hbm [shape: f32[16,16], index: 0, kind: input, shape index: {}]
  %s1 = inlined_call_operand.hbm [shape: f32[16,32], index: 1, kind: input, shape index: {}]
  %s2 = inlined_call_operand.vmem [shape: f32[4,32], index: 2, kind: input, shape index: {}]
  %s3 = inlined_call_operand.hbm [shape: f32[16,32], index: 3, kind: input, shape index: {}]
  %s4 = inlined_call_operand.vmem [shape: f32[32,32], index: 4, kind: input, shape index: {}]
  %s5 = inlined_call_operand.vmem [shape: f32[1,32], index: 5, kind: input, shape index: {}]
  %s6 = inlined_call_operand.vmem [shape: f32[32,8], index: 6, kind: input, shape index: {}]
  %s7 = inlined_call_operand.vmem [shape: f32[1,8], index: 7, kind: input, shape index: {}]
  %s8 = inlined_call_operand.hbm [shape: f32[16,32], index: 8, kind: output, shape index: {0}]
  %s9 = inlined_call_operand.hbm [shape: f32[16,32], index: 9, kind: output, shape index: {1}]
  %10 = xla_tuple %s8, %s9
  %s11 = sld [smem:[#allocation0]]
  $region62: #{tpu_custom_call.1} parent=0
    _
  %s13 = ssub.s32 1, %s11
  %s14 = scalar_select 0, %s13, %s11
  $region1: #{tpu_custom_call.1} parent=0
    #allocation2 [shape = 'u8[8192]{0}', space=vmem, size = 0x2000, scoped, tag = 'input window, operand 0, single buffered']
    #allocation3 [shape = 's32[1]{0}', space=sflag, size = 0x4, scoped, tag = 'scoped memory for tpu_custom_call.1']
    #allocation4 [shape = 's32[1]{0}', space=sflag, size = 0x4, scoped, tag = 'scoped memory for tpu_custom_call.1']
    #allocation5 [shape = 'u8[8192]{0}', space=vmem, size = 0x2000, scoped, tag = 'input window, operand 1, single buffered']
    #allocation6 [shape = 's32[1]{0}', space=sflag, size = 0x4, scoped, tag = 'scoped memory for tpu_custom_call.1']
    #allocation7 [shape = 'u8[8192]{0}', space=vmem, size = 0x2000, scoped, tag = 'input window, operand 3, single buffered']
    #allocation8 [shape = 'u8[8192]{0}', space=vmem, size = 0x2000, scoped, tag = 'output window, operand 0, single buffered']
    #allocation9 [shape = 'u8[8192]{0}', space=vmem, size = 0x2000, scoped, tag = 'output window, operand 1, single buffered']
    #allocation10 [shape = 's32[1]{0}', space=sflag, size = 0x4, scoped, tag = 'scoped memory for tpu_custom_call.1']
    %15 = vsyncpa [#allocation3], 0
    %16 = vsyncpa [#allocation6], 0
    %17 = vsyncpa [#allocation4], 0
    %18 = vsyncpa [#allocation10], 0
    // Predicated region
    $region2: #{tpu_custom_call.1} parent=1 // pred_check
      _
    $region3: #{tpu_custom_call.1} parent=1 // pred_check_branch
      %20 = sbr.rel (0) target = $region5
    $region4: #{tpu_custom_call.1} parent=1 // pred_region
      %22 = vsyncadd [#allocation3], 0
      %s23 = sshll.u32 %s0, 4
      %s24 = int_to_ptr.hbm [resolvable:$true] %s23
      %s25 = sshll.u32 [#allocation2], 4
      %s26 = int_to_ptr.vmem [resolvable:$true] %s25
      %31 = dma.hbm_to_vmem [thread:$0]  %s24, 256, %s26, [#allocation3], 128, 128, 8
    $region5: #{tpu_custom_call.1} parent=1 // pred_fallthru
      _
    // Predicated region
    $region6: #{tpu_custom_call.1} parent=1 // pred_check
      _
    $region7: #{tpu_custom_call.1} parent=1 // pred_check_branch
      %33 = sbr.rel (0) target = $region9
    $region8: #{tpu_custom_call.1} parent=1 // pred_region
      %35 = vsyncadd [#allocation6], 0
      %s36 = sshll.u32 %s1, 4
      %s37 = int_to_ptr.hbm [resolvable:$true] %s36
      %s38 = sshll.u32 [#allocation5], 4
      %s39 = int_to_ptr.vmem [resolvable:$true] %s38
      %44 = dma.hbm_to_vmem [thread:$0]  %s37, 256, %s39, [#allocation6], 128, 128, 8
    $region9: #{tpu_custom_call.1} parent=1 // pred_fallthru
      _
    // Predicated region
    $region10: #{tpu_custom_call.1} parent=1 // pred_check
      _
    $region11: #{tpu_custom_call.1} parent=1 // pred_check_branch
      %46 = sbr.rel (0) target = $region13
    $region12: #{tpu_custom_call.1} parent=1 // pred_region
      _
    $region13: #{tpu_custom_call.1} parent=1 // pred_fallthru
      _
    // Predicated region
    $region14: #{tpu_custom_call.1} parent=1 // pred_check
      _
    $region15: #{tpu_custom_call.1} parent=1 // pred_check_branch
      %48 = sbr.rel (0) target = $region17
    $region16: #{tpu_custom_call.1} parent=1 // pred_region
      %50 = vsyncadd [#allocation6], 0
      %s51 = sshll.u32 %s3, 4
      %s52 = int_to_ptr.hbm [resolvable:$true] %s51
      %s53 = sshll.u32 [#allocation7], 4
      %s54 = int_to_ptr.vmem [resolvable:$true] %s53
      %59 = dma.hbm_to_vmem [thread:$0]  %s52, 256, %s54, [#allocation6], 128, 128, 8
    $region17: #{tpu_custom_call.1} parent=1 // pred_fallthru
      _
    // Predicated region
    $region18: #{tpu_custom_call.1} parent=1 // pred_check
      _
    $region19: #{tpu_custom_call.1} parent=1 // pred_check_branch
      %61 = sbr.rel (0) target = $region21
    $region20: #{tpu_custom_call.1} parent=1 // pred_region
      _
    $region21: #{tpu_custom_call.1} parent=1 // pred_fallthru
      _
    // Predicated region
    $region22: #{tpu_custom_call.1} parent=1 // pred_check
      _
    $region23: #{tpu_custom_call.1} parent=1 // pred_check_branch
      %63 = sbr.rel (0) target = $region25
    $region24: #{tpu_custom_call.1} parent=1 // pred_region
      _
    $region25: #{tpu_custom_call.1} parent=1 // pred_fallthru
      _
    // Predicated region
    $region26: #{tpu_custom_call.1} parent=1 // pred_check
      _
    $region27: #{tpu_custom_call.1} parent=1 // pred_check_branch
      %65 = sbr.rel (0) target = $region29
    $region28: #{tpu_custom_call.1} parent=1 // pred_region
      _
    $region29: #{tpu_custom_call.1} parent=1 // pred_fallthru
      _
    // Predicated region
    $region30: #{tpu_custom_call.1} parent=1 // pred_check
      _
    $region31: #{tpu_custom_call.1} parent=1 // pred_check_branch
      %67 = sbr.rel (0) target = $region33
    $region32: #{tpu_custom_call.1} parent=1 // pred_region
      _
    $region33: #{tpu_custom_call.1} parent=1 // pred_fallthru
      _
    // Predicated region
    $region34: #{tpu_custom_call.1} parent=1 // pred_check
      _
    $region35: #{tpu_custom_call.1} parent=1 // pred_check_branch
      %69 = sbr.rel (0) target = $region37
    $region36: #{tpu_custom_call.1} parent=1 // pred_region
      %71 = dma.done [#allocation3], 256
    $region37: #{tpu_custom_call.1} parent=1 // pred_fallthru
      _
    // Predicated region
    $region38: #{tpu_custom_call.1} parent=1 // pred_check
      _
    $region39: #{tpu_custom_call.1} parent=1 // pred_check_branch
      %73 = sbr.rel (0) target = $region41
    $region40: #{tpu_custom_call.1} parent=1 // pred_region
      %75 = dma.done [#allocation6], 256
    $region41: #{tpu_custom_call.1} parent=1 // pred_fallthru
      _
    // Predicated region
    $region42: #{tpu_custom_call.1} parent=1 // pred_check
      _
    $region43: #{tpu_custom_call.1} parent=1 // pred_check_branch
      %77 = sbr.rel (0) target = $region45
    $region44: #{tpu_custom_call.1} parent=1 // pred_region
      %79 = dma.done [#allocation6], 256
    $region45: #{tpu_custom_call.1} parent=1 // pred_fallthru
      _
    %v80 = vld [vmem:[#allocation2] sm:$0xff]
    %v81 = vld [vmem:[#allocation2 + $0x8] sm:$0xff]
    %v82 = vld [vmem:[#allocation7] sm:$0xff]
    %v83 = vld [vmem:[#allocation7 + $0x8] sm:$0xff]
    %vm84 = vcmask 130048
    %v86 = vsel %vm84, %v80, 0
    %v89 = vsel %vm84, %v81, 0
    %91 = vmatpush.msra.mxu0 0.0
    %92 = vmatpush.msra.mxu0 0.0
    %93 = vmatpush.msra.mxu0 0.0
    %94 = vmatpush.msra.mxu0 0.0
    %95 = vmatpush.msra.mxu0 0.0
    %96 = vmatpush.msra.mxu0 0.0
    %97 = vmatpush.msra.mxu0 0.0
    %98 = vmatpush.msra.mxu0 0.0
    %99 = vmatpush.msra.mxu0 0.0
    %100 = vmatpush.msra.mxu0 0.0
    %101 = vmatpush.msra.mxu0 0.0
    %102 = vmatpush.msra.mxu0 0.0
    %103 = vmatpush.msra.mxu0 0.0
    %104 = vmatpush.msra.mxu0 0.0
    %105 = vmatpush.msra.mxu0 %v83
    %106 = vmatpush.msra.mxu0 %v82
    %107 = vmatmul.f32.gmra.mxu0 %v86
    %v108 = vpop.f32.mrf.mxu0
    %v109 = vadd.f32 0.0, %v108
    %110 = vmatmul.f32.gmra.mxu0 %v89
    %v111 = vpop.f32.mrf.mxu0
    %v112 = vadd.f32 0.0, %v111
    %113 = vdwg.mxu0
    %v114 = vld [vmem:[%s2] sm:$0xf]
    %v115 = vperm.slane %v114, 0
    %v116 = vadd.f32 %v109, %v115
    %v117 = vadd.f32 %v112, %v115
    %vm118 = vcmp.gt.f32.partialorder %v116, 0.0
    %vm119 = vcmp.gt.f32.partialorder %v117, 0.0
    %v120 = vmin.f32 %v116, 0.0
    %v121 = vmin.f32 %v117, 0.0
    %v122 = vmul.f32 %v120, 1.442695
    %v123 = vpow.pop %v122
    %v124 = vmul.f32 %v121, 1.442695
    %v125 = vpow.pop %v124
    %v126 = vsub.f32 %v123, 1.0
    %v127 = vsub.f32 %v125, 1.0
    %v128 = vsel %vm118, %v116, %v126
    %v129 = vsel %vm119, %v117, %v127
    %v130 = vld [vmem:[%s4] sm:$0xff]
    %v131 = vld [vmem:[%s4 + $0x8] sm:$0xff]
    %v132 = vld [vmem:[%s4 + $0x10] sm:$0xff]
    %v133 = vld [vmem:[%s4 + $0x18] sm:$0xff]
    %v134 = vld [vmem:[%s5] sm:$0x1]
    %v136 = vperm.slane %v134, 0
    %vm138 = vcmask 261120
    %v140 = vsel %vm138, %v128, 0
    %v143 = vsel %vm138, %v129, 0
    %145 = vmatpush.msra.mxu0 0.0
    %146 = vmatpush.msra.mxu0 0.0
    %147 = vmatpush.msra.mxu0 0.0
    %148 = vmatpush.msra.mxu0 0.0
    %149 = vmatpush.msra.mxu0 0.0
    %150 = vmatpush.msra.mxu0 0.0
    %151 = vmatpush.msra.mxu0 0.0
    %152 = vmatpush.msra.mxu0 0.0
    %153 = vmatpush.msra.mxu0 0.0
    %154 = vmatpush.msra.mxu0 0.0
    %155 = vmatpush.msra.mxu0 0.0
    %156 = vmatpush.msra.mxu0 0.0
    %157 = vmatpush.msra.mxu0 %v133
    %158 = vmatpush.msra.mxu0 %v132
    %159 = vmatpush.msra.mxu0 %v131
    %160 = vmatpush.msra.mxu0 %v130
    %161 = vmatmul.f32.gmra.mxu0 %v140
    %v162 = vpop.f32.mrf.mxu0
    %v163 = vadd.f32 %v136, %v162
    %164 = vmatmul.f32.gmra.mxu0 %v143
    %v165 = vpop.f32.mrf.mxu0
    %v166 = vadd.f32 %v136, %v165
    %167 = vdwg.mxu0
    %vm168 = vcmp.gt.f32.partialorder %v163, 0.0
    %vm169 = vcmp.gt.f32.partialorder %v166, 0.0
    %v170 = vmin.f32 %v163, 0.0
    %v171 = vmin.f32 %v166, 0.0
    %v172 = vmul.f32 %v170, 1.442695
    %v173 = vpow.pop %v172
    %v174 = vmul.f32 %v171, 1.442695
    %v175 = vpow.pop %v174
    %v176 = vsub.f32 %v173, 1.0
    %v177 = vsub.f32 %v175, 1.0
    %v178 = vsel %vm168, %v163, %v176
    %v179 = vsel %vm169, %v166, %v177
    %v180 = vld [vmem:[%s6] sm:$0xff]
    %v181 = vld [vmem:[%s6 + $0x8] sm:$0xff]
    %v182 = vld [vmem:[%s6 + $0x10] sm:$0xff]
    %v183 = vld [vmem:[%s6 + $0x18] sm:$0xff]
    %v184 = vld [vmem:[%s7] sm:$0x1]
    %v186 = vperm.slane %v184, 0
    %v189 = vsel %vm138, %v178, 0
    %v192 = vsel %vm138, %v179, 0
    %194 = vmatpush.msra.mxu0 0.0
    %195 = vmatpush.msra.mxu0 0.0
    %196 = vmatpush.msra.mxu0 0.0
    %197 = vmatpush.msra.mxu0 0.0
    %198 = vmatpush.msra.mxu0 0.0
    %199 = vmatpush.msra.mxu0 0.0
    %200 = vmatpush.msra.mxu0 0.0
    %201 = vmatpush.msra.mxu0 0.0
    %202 = vmatpush.msra.mxu0 0.0
    %203 = vmatpush.msra.mxu0 0.0
    %204 = vmatpush.msra.mxu0 0.0
    %205 = vmatpush.msra.mxu0 0.0
    %206 = vmatpush.msra.mxu0 %v183
    %207 = vmatpush.msra.mxu0 %v182
    %208 = vmatpush.msra.mxu0 %v181
    %209 = vmatpush.msra.mxu0 %v180
    %210 = vmatmul.f32.gmra.mxu0 %v189
    %v211 = vpop.f32.mrf.mxu0
    %v212 = vadd.f32 %v186, %v211
    %213 = vmatmul.f32.gmra.mxu0 %v192
    %v214 = vpop.f32.mrf.mxu0
    %v215 = vadd.f32 %v186, %v214
    %216 = vdwg.mxu0
    %vm217 = vcmask 64512
    %v218 = vsel %vm217, %v212, -inf
    %219 = vmax.xlane.f32.xlu0 %v218
    %v220 = vpop.xlane.xlu0 %219
    %v221 = vsel %vm217, %v215, -inf
    %222 = vmax.xlane.f32.xlu0 %v221
    %v223 = vpop.xlane.xlu0 %222
    %v224 = vsub.f32 %v212, %v220
    %v225 = vsub.f32 %v215, %v223
    %v226 = vmul.f32 %v224, 1.442695
    %v227 = vpow.pop %v226
    %v228 = vmul.f32 %v225, 1.442695
    %v229 = vpow.pop %v228
    %v230 = vsel %vm217, %v227, 0.0
    %231 = vadd.xlane.f32.xlu0 %v230
    %v232 = vpop.xlane.xlu0 %231
    %v233 = vsel %vm217, %v229, 0.0
    %234 = vadd.xlane.f32.xlu0 %v233
    %v235 = vpop.xlane.xlu0 %234
    %v236 = vrcp.pop %v232
    %v237 = vmul.f32 %v232, %v236
    %v238 = vsub.f32 1.0, %v237
    %v239 = vmul.f32 %v236, %v238
    %v240 = vadd.f32 %v236, %v239
    %vm241 = vweird.f32 %v232
    %vm242 = vweird.f32 %v236
    %vm243 = vmor %vm241, %vm242
    %v244 = vsel %vm243, %v236, %v240
    %v245 = vand.u32 2147483647, %v232
    %vm246 = vcmp.eq.f32.partialorder %v245, 8.507059e+37
    %v247 = vand.u32 %v232, 2147483648
    %v248 = vor.u32 1.1754944e-38, %v247
    %v249 = vsel %vm246, %v248, %v244
    %v250 = vrcp.pop %v235
    %v251 = vmul.f32 %v235, %v250
    %v252 = vsub.f32 1.0, %v251
    %v253 = vmul.f32 %v250, %v252
    %v254 = vadd.f32 %v250, %v253
    %vm255 = vweird.f32 %v235
    %vm256 = vweird.f32 %v250
    %vm257 = vmor %vm255, %vm256
    %v258 = vsel %vm257, %v250, %v254
    %v259 = vand.u32 2147483647, %v235
    %vm260 = vcmp.eq.f32.partialorder %v259, 8.507059e+37
    %v261 = vand.u32 %v235, 2147483648
    %v262 = vor.u32 1.1754944e-38, %v261
    %v263 = vsel %vm260, %v262, %v258
    %v264 = vmul.f32 %v227, %v249
    %v265 = vmul.f32 %v229, %v263
    %266 = vst.msk [vmem:[#allocation9] sm:$0xff] %vm217, %v264
    %267 = vst.msk [vmem:[#allocation9 + $0x8] sm:$0xff] %vm217, %v265
    %v268 = vld [vmem:[#allocation5] sm:$0xff]
    %v269 = vld [vmem:[#allocation5 + $0x8] sm:$0xff]
    %v270 = vadd.f32 %v212, %v268
    %v271 = vadd.f32 %v215, %v269
    %v272 = vmul.f32 %v270, 2.0
    %v273 = vmul.f32 %v271, 2.0
    %v274 = vsel %vm217, %v272, -inf
    %275 = vmax.xlane.f32.xlu0 %v274
    %v276 = vpop.xlane.xlu0 %275
    %v277 = vsel %vm217, %v273, -inf
    %278 = vmax.xlane.f32.xlu0 %v277
    %v279 = vpop.xlane.xlu0 %278
    %v280 = vsub.f32 %v272, %v276
    %v281 = vsub.f32 %v273, %v279
    %v282 = vmul.f32 %v280, 1.442695
    %v283 = vpow.pop %v282
    %v284 = vmul.f32 %v281, 1.442695
    %v285 = vpow.pop %v284
    %v286 = vsel %vm217, %v283, 0.0
    %287 = vadd.xlane.f32.xlu0 %v286
    %v288 = vpop.xlane.xlu0 %287
    %v289 = vsel %vm217, %v285, 0.0
    %290 = vadd.xlane.f32.xlu0 %v289
    %v291 = vpop.xlane.xlu0 %290
    %v292 = vrcp.pop %v288
    %v293 = vmul.f32 %v288, %v292
    %v294 = vsub.f32 1.0, %v293
    %v295 = vmul.f32 %v292, %v294
    %v296 = vadd.f32 %v292, %v295
    %vm297 = vweird.f32 %v288
    %vm298 = vweird.f32 %v292
    %vm299 = vmor %vm297, %vm298
    %v300 = vsel %vm299, %v292, %v296
    %v301 = vand.u32 2147483647, %v288
    %vm302 = vcmp.eq.f32.partialorder %v301, 8.507059e+37
    %v303 = vand.u32 %v288, 2147483648
    %v304 = vor.u32 1.1754944e-38, %v303
    %v305 = vsel %vm302, %v304, %v300
    %v306 = vrcp.pop %v291
    %v307 = vmul.f32 %v291, %v306
    %v308 = vsub.f32 1.0, %v307
    %v309 = vmul.f32 %v306, %v308
    %v310 = vadd.f32 %v306, %v309
    %vm311 = vweird.f32 %v291
    %vm312 = vweird.f32 %v306
    %vm313 = vmor %vm311, %vm312
    %v314 = vsel %vm313, %v306, %v310
    %v315 = vand.u32 2147483647, %v291
    %vm316 = vcmp.eq.f32.partialorder %v315, 8.507059e+37
    %v317 = vand.u32 %v291, 2147483648
    %v318 = vor.u32 1.1754944e-38, %v317
    %v319 = vsel %vm316, %v318, %v314
    %v320 = vmul.f32 %v283, %v305
    %v321 = vmul.f32 %v285, %v319
    %322 = vst.msk [vmem:[#allocation8] sm:$0xff] %vm217, %v320
    %323 = vst.msk [vmem:[#allocation8 + $0x8] sm:$0xff] %vm217, %v321
    %v324 = vperm.slane %v114, 1
    %v325 = vadd.f32 %v109, %v324
    %v326 = vadd.f32 %v112, %v324
    %vm327 = vcmp.gt.f32.partialorder %v325, 0.0
    %vm328 = vcmp.gt.f32.partialorder %v326, 0.0
    %v329 = vmin.f32 %v325, 0.0
    %v330 = vmin.f32 %v326, 0.0
    %v331 = vmul.f32 %v329, 1.442695
    %v332 = vpow.pop %v331
    %v333 = vmul.f32 %v330, 1.442695
    %v334 = vpow.pop %v333
    %v335 = vsub.f32 %v332, 1.0
    %v336 = vsub.f32 %v334, 1.0
    %v337 = vsel %vm327, %v325, %v335
    %v338 = vsel %vm328, %v326, %v336
    %v339 = vld [vmem:[%s4] sm:$0xff]
    %v340 = vld [vmem:[%s4 + $0x8] sm:$0xff]
    %v341 = vld [vmem:[%s4 + $0x10] sm:$0xff]
    %v342 = vld [vmem:[%s4 + $0x18] sm:$0xff]
    %v343 = vld [vmem:[%s5] sm:$0x1]
    %v345 = vperm.slane %v343, 0
    %v348 = vsel %vm138, %v337, 0
    %v351 = vsel %vm138, %v338, 0
    %353 = vmatpush.msra.mxu0 0.0
    %354 = vmatpush.msra.mxu0 0.0
    %355 = vmatpush.msra.mxu0 0.0
    %356 = vmatpush.msra.mxu0 0.0
    %357 = vmatpush.msra.mxu0 0.0
    %358 = vmatpush.msra.mxu0 0.0
    %359 = vmatpush.msra.mxu0 0.0
    %360 = vmatpush.msra.mxu0 0.0
    %361 = vmatpush.msra.mxu0 0.0
    %362 = vmatpush.msra.mxu0 0.0
    %363 = vmatpush.msra.mxu0 0.0
    %364 = vmatpush.msra.mxu0 0.0
    %365 = vmatpush.msra.mxu0 %v342
    %366 = vmatpush.msra.mxu0 %v341
    %367 = vmatpush.msra.mxu0 %v340
    %368 = vmatpush.msra.mxu0 %v339
    %369 = vmatmul.f32.gmra.mxu0 %v348
    %v370 = vpop.f32.mrf.mxu0
    %v371 = vadd.f32 %v345, %v370
    %372 = vmatmul.f32.gmra.mxu0 %v351
    %v373 = vpop.f32.mrf.mxu0
    %v374 = vadd.f32 %v345, %v373
    %375 = vdwg.mxu0
    %vm376 = vcmp.gt.f32.partialorder %v371, 0.0
    %vm377 = vcmp.gt.f32.partialorder %v374, 0.0
    %v378 = vmin.f32 %v371, 0.0
    %v379 = vmin.f32 %v374, 0.0
    %v380 = vmul.f32 %v378, 1.442695
    %v381 = vpow.pop %v380
    %v382 = vmul.f32 %v379, 1.442695
    %v383 = vpow.pop %v382
    %v384 = vsub.f32 %v381, 1.0
    %v385 = vsub.f32 %v383, 1.0
    %v386 = vsel %vm376, %v371, %v384
    %v387 = vsel %vm377, %v374, %v385
    %v388 = vld [vmem:[%s6] sm:$0xff]
    %v389 = vld [vmem:[%s6 + $0x8] sm:$0xff]
    %v390 = vld [vmem:[%s6 + $0x10] sm:$0xff]
    %v391 = vld [vmem:[%s6 + $0x18] sm:$0xff]
    %v392 = vld [vmem:[%s7] sm:$0x1]
    %v394 = vperm.slane %v392, 0
    %v397 = vsel %vm138, %v386, 0
    %v400 = vsel %vm138, %v387, 0
    %402 = vmatpush.msra.mxu0 0.0
    %403 = vmatpush.msra.mxu0 0.0
    %404 = vmatpush.msra.mxu0 0.0
    %405 = vmatpush.msra.mxu0 0.0
    %406 = vmatpush.msra.mxu0 0.0
    %407 = vmatpush.msra.mxu0 0.0
    %408 = vmatpush.msra.mxu0 0.0
    %409 = vmatpush.msra.mxu0 0.0
    %410 = vmatpush.msra.mxu0 0.0
    %411 = vmatpush.msra.mxu0 0.0
    %412 = vmatpush.msra.mxu0 0.0
    %413 = vmatpush.msra.mxu0 0.0
    %414 = vmatpush.msra.mxu0 %v391
    %415 = vmatpush.msra.mxu0 %v390
    %416 = vmatpush.msra.mxu0 %v389
    %417 = vmatpush.msra.mxu0 %v388
    %418 = vmatmul.f32.gmra.mxu0 %v397
    %v419 = vpop.f32.mrf.mxu0
    %v420 = vadd.f32 %v394, %v419
    %421 = vmatmul.f32.gmra.mxu0 %v400
    %v422 = vpop.f32.mrf.mxu0
    %v423 = vadd.f32 %v394, %v422
    %424 = vdwg.mxu0
    %v425 = vsel %vm217, %v420, -inf
    %426 = vmax.xlane.f32.xlu0 %v425
    %v427 = vpop.xlane.xlu0 %426
    %v428 = vsel %vm217, %v423, -inf
    %429 = vmax.xlane.f32.xlu0 %v428
    %v430 = vpop.xlane.xlu0 %429
    %v431 = vsub.f32 %v420, %v427
    %v432 = vsub.f32 %v423, %v430
    %v433 = vmul.f32 %v431, 1.442695
    %v434 = vpow.pop %v433
    %v435 = vmul.f32 %v432, 1.442695
    %v436 = vpow.pop %v435
    %v437 = vsel %vm217, %v434, 0.0
    %438 = vadd.xlane.f32.xlu0 %v437
    %v439 = vpop.xlane.xlu0 %438
    %v440 = vsel %vm217, %v436, 0.0
    %441 = vadd.xlane.f32.xlu0 %v440
    %v442 = vpop.xlane.xlu0 %441
    %v443 = vrcp.pop %v439
    %v444 = vmul.f32 %v439, %v443
    %v445 = vsub.f32 1.0, %v444
    %v446 = vmul.f32 %v443, %v445
    %v447 = vadd.f32 %v443, %v446
    %vm448 = vweird.f32 %v439
    %vm449 = vweird.f32 %v443
    %vm450 = vmor %vm448, %vm449
    %v451 = vsel %vm450, %v443, %v447
    %v452 = vand.u32 2147483647, %v439
    %vm453 = vcmp.eq.f32.partialorder %v452, 8.507059e+37
    %v454 = vand.u32 %v439, 2147483648
    %v455 = vor.u32 1.1754944e-38, %v454
    %v456 = vsel %vm453, %v455, %v451
    %v457 = vrcp.pop %v442
    %v458 = vmul.f32 %v442, %v457
    %v459 = vsub.f32 1.0, %v458
    %v460 = vmul.f32 %v457, %v459
    %v461 = vadd.f32 %v457, %v460
    %vm462 = vweird.f32 %v442
    %vm463 = vweird.f32 %v457
    %vm464 = vmor %vm462, %vm463
    %v465 = vsel %vm464, %v457, %v461
    %v466 = vand.u32 2147483647, %v442
    %vm467 = vcmp.eq.f32.partialorder %v466, 8.507059e+37
    %v468 = vand.u32 %v442, 2147483648
    %v469 = vor.u32 1.1754944e-38, %v468
    %v470 = vsel %vm467, %v469, %v465
    %v471 = vmul.f32 %v434, %v456
    %v472 = vmul.f32 %v436, %v470
    %475 = vrot.lane.b32.xlu0 %v471, 8
    %v476 = vpop.permute.xlu0 %475
    %477 = vrot.lane.b32.xlu0 %v472, 8
    %v478 = vpop.permute.xlu0 %477
    %vm481 = vcmask 130112
    %482 = vst.msk [vmem:[#allocation9] sm:$0xff] %vm481, %v476
    %483 = vst.msk [vmem:[#allocation9 + $0x8] sm:$0xff] %vm481, %v478
    %v484 = vld [vmem:[#allocation5] sm:$0xff]
    %v485 = vld [vmem:[#allocation5 + $0x8] sm:$0xff]
    %488 = vrot.lane.b32.xlu0 %v484, 120
    %v489 = vpop.permute.xlu0 %488
    %490 = vrot.lane.b32.xlu0 %v485, 120
    %v491 = vpop.permute.xlu0 %490
    %v494 = vadd.f32 %v420, %v489
    %v495 = vadd.f32 %v423, %v491
    %v496 = vmul.f32 %v494, 2.0
    %v497 = vmul.f32 %v495, 2.0
    %v498 = vsel %vm217, %v496, -inf
    %499 = vmax.xlane.f32.xlu0 %v498
    %v500 = vpop.xlane.xlu0 %499
    %v501 = vsel %vm217, %v497, -inf
    %502 = vmax.xlane.f32.xlu0 %v501
    %v503 = vpop.xlane.xlu0 %502
    %v504 = vsub.f32 %v496, %v500
    %v505 = vsub.f32 %v497, %v503
    %v506 = vmul.f32 %v504, 1.442695
    %v507 = vpow.pop %v506
    %v508 = vmul.f32 %v505, 1.442695
    %v509 = vpow.pop %v508
    %v510 = vsel %vm217, %v507, 0.0
    %511 = vadd.xlane.f32.xlu0 %v510
    %v512 = vpop.xlane.xlu0 %511
    %v513 = vsel %vm217, %v509, 0.0
    %514 = vadd.xlane.f32.xlu0 %v513
    %v515 = vpop.xlane.xlu0 %514
    %v516 = vrcp.pop %v512
    %v517 = vmul.f32 %v512, %v516
    %v518 = vsub.f32 1.0, %v517
    %v519 = vmul.f32 %v516, %v518
    %v520 = vadd.f32 %v516, %v519
    %vm521 = vweird.f32 %v512
    %vm522 = vweird.f32 %v516
    %vm523 = vmor %vm521, %vm522
    %v524 = vsel %vm523, %v516, %v520
    %v525 = vand.u32 2147483647, %v512
    %vm526 = vcmp.eq.f32.partialorder %v525, 8.507059e+37
    %v527 = vand.u32 %v512, 2147483648
    %v528 = vor.u32 1.1754944e-38, %v527
    %v529 = vsel %vm526, %v528, %v524
    %v530 = vrcp.pop %v515
    %v531 = vmul.f32 %v515, %v530
    %v532 = vsub.f32 1.0, %v531
    %v533 = vmul.f32 %v530, %v532
    %v534 = vadd.f32 %v530, %v533
    %vm535 = vweird.f32 %v515
    %vm536 = vweird.f32 %v530
    %vm537 = vmor %vm535, %vm536
    %v538 = vsel %vm537, %v530, %v534
    %v539 = vand.u32 2147483647, %v515
    %vm540 = vcmp.eq.f32.partialorder %v539, 8.507059e+37
    %v541 = vand.u32 %v515, 2147483648
    %v542 = vor.u32 1.1754944e-38, %v541
    %v543 = vsel %vm540, %v542, %v538
    %v544 = vmul.f32 %v507, %v529
    %v545 = vmul.f32 %v509, %v543
    %548 = vrot.lane.b32.xlu0 %v544, 8
    %v549 = vpop.permute.xlu0 %548
    %550 = vrot.lane.b32.xlu0 %v545, 8
    %v551 = vpop.permute.xlu0 %550
    %554 = vst.msk [vmem:[#allocation8] sm:$0xff] %vm481, %v549
    %555 = vst.msk [vmem:[#allocation8 + $0x8] sm:$0xff] %vm481, %v551
    %v556 = vperm.slane %v114, 2
    %v557 = vadd.f32 %v109, %v556
    %v558 = vadd.f32 %v112, %v556
    %vm559 = vcmp.gt.f32.partialorder %v557, 0.0
    %vm560 = vcmp.gt.f32.partialorder %v558, 0.0
    %v561 = vmin.f32 %v557, 0.0
    %v562 = vmin.f32 %v558, 0.0
    %v563 = vmul.f32 %v561, 1.442695
    %v564 = vpow.pop %v563
    %v565 = vmul.f32 %v562, 1.442695
    %v566 = vpow.pop %v565
    %v567 = vsub.f32 %v564, 1.0
    %v568 = vsub.f32 %v566, 1.0
    %v569 = vsel %vm559, %v557, %v567
    %v570 = vsel %vm560, %v558, %v568
    %v571 = vld [vmem:[%s4] sm:$0xff]
    %v572 = vld [vmem:[%s4 + $0x8] sm:$0xff]
    %v573 = vld [vmem:[%s4 + $0x10] sm:$0xff]
    %v574 = vld [vmem:[%s4 + $0x18] sm:$0xff]
    %v575 = vld [vmem:[%s5] sm:$0x1]
    %v577 = vperm.slane %v575, 0
    %v580 = vsel %vm138, %v569, 0
    %v583 = vsel %vm138, %v570, 0
    %585 = vmatpush.msra.mxu0 0.0
    %586 = vmatpush.msra.mxu0 0.0
    %587 = vmatpush.msra.mxu0 0.0
    %588 = vmatpush.msra.mxu0 0.0
    %589 = vmatpush.msra.mxu0 0.0
    %590 = vmatpush.msra.mxu0 0.0
    %591 = vmatpush.msra.mxu0 0.0
    %592 = vmatpush.msra.mxu0 0.0
    %593 = vmatpush.msra.mxu0 0.0
    %594 = vmatpush.msra.mxu0 0.0
    %595 = vmatpush.msra.mxu0 0.0
    %596 = vmatpush.msra.mxu0 0.0
    %597 = vmatpush.msra.mxu0 %v574
    %598 = vmatpush.msra.mxu0 %v573
    %599 = vmatpush.msra.mxu0 %v572
    %600 = vmatpush.msra.mxu0 %v571
    %601 = vmatmul.f32.gmra.mxu0 %v580
    %v602 = vpop.f32.mrf.mxu0
    %v603 = vadd.f32 %v577, %v602
    %604 = vmatmul.f32.gmra.mxu0 %v583
    %v605 = vpop.f32.mrf.mxu0
    %v606 = vadd.f32 %v577, %v605
    %607 = vdwg.mxu0
    %vm608 = vcmp.gt.f32.partialorder %v603, 0.0
    %vm609 = vcmp.gt.f32.partialorder %v606, 0.0
    %v610 = vmin.f32 %v603, 0.0
    %v611 = vmin.f32 %v606, 0.0
    %v612 = vmul.f32 %v610, 1.442695
    %v613 = vpow.pop %v612
    %v614 = vmul.f32 %v611, 1.442695
    %v615 = vpow.pop %v614
    %v616 = vsub.f32 %v613, 1.0
    %v617 = vsub.f32 %v615, 1.0
    %v618 = vsel %vm608, %v603, %v616
    %v619 = vsel %vm609, %v606, %v617
    %v620 = vld [vmem:[%s6] sm:$0xff]
    %v621 = vld [vmem:[%s6 + $0x8] sm:$0xff]
    %v622 = vld [vmem:[%s6 + $0x10] sm:$0xff]
    %v623 = vld [vmem:[%s6 + $0x18] sm:$0xff]
    %v624 = vld [vmem:[%s7] sm:$0x1]
    %v626 = vperm.slane %v624, 0
    %v629 = vsel %vm138, %v618, 0
    %v632 = vsel %vm138, %v619, 0
    %634 = vmatpush.msra.mxu0 0.0
    %635 = vmatpush.msra.mxu0 0.0
    %636 = vmatpush.msra.mxu0 0.0
    %637 = vmatpush.msra.mxu0 0.0
    %638 = vmatpush.msra.mxu0 0.0
    %639 = vmatpush.msra.mxu0 0.0
    %640 = vmatpush.msra.mxu0 0.0
    %641 = vmatpush.msra.mxu0 0.0
    %642 = vmatpush.msra.mxu0 0.0
    %643 = vmatpush.msra.mxu0 0.0
    %644 = vmatpush.msra.mxu0 0.0
    %645 = vmatpush.msra.mxu0 0.0
    %646 = vmatpush.msra.mxu0 %v623
    %647 = vmatpush.msra.mxu0 %v622
    %648 = vmatpush.msra.mxu0 %v621
    %649 = vmatpush.msra.mxu0 %v620
    %650 = vmatmul.f32.gmra.mxu0 %v629
    %v651 = vpop.f32.mrf.mxu0
    %v652 = vadd.f32 %v626, %v651
    %653 = vmatmul.f32.gmra.mxu0 %v632
    %v654 = vpop.f32.mrf.mxu0
    %v655 = vadd.f32 %v626, %v654
    %656 = vdwg.mxu0
    %v657 = vsel %vm217, %v652, -inf
    %658 = vmax.xlane.f32.xlu0 %v657
    %v659 = vpop.xlane.xlu0 %658
    %v660 = vsel %vm217, %v655, -inf
    %661 = vmax.xlane.f32.xlu0 %v660
    %v662 = vpop.xlane.xlu0 %661
    %v663 = vsub.f32 %v652, %v659
    %v664 = vsub.f32 %v655, %v662
    %v665 = vmul.f32 %v663, 1.442695
    %v666 = vpow.pop %v665
    %v667 = vmul.f32 %v664, 1.442695
    %v668 = vpow.pop %v667
    %v669 = vsel %vm217, %v666, 0.0
    %670 = vadd.xlane.f32.xlu0 %v669
    %v671 = vpop.xlane.xlu0 %670
    %v672 = vsel %vm217, %v668, 0.0
    %673 = vadd.xlane.f32.xlu0 %v672
    %v674 = vpop.xlane.xlu0 %673
    %v675 = vrcp.pop %v671
    %v676 = vmul.f32 %v671, %v675
    %v677 = vsub.f32 1.0, %v676
    %v678 = vmul.f32 %v675, %v677
    %v679 = vadd.f32 %v675, %v678
    %vm680 = vweird.f32 %v671
    %vm681 = vweird.f32 %v675
    %vm682 = vmor %vm680, %vm681
    %v683 = vsel %vm682, %v675, %v679
    %v684 = vand.u32 2147483647, %v671
    %vm685 = vcmp.eq.f32.partialorder %v684, 8.507059e+37
    %v686 = vand.u32 %v671, 2147483648
    %v687 = vor.u32 1.1754944e-38, %v686
    %v688 = vsel %vm685, %v687, %v683
    %v689 = vrcp.pop %v674
    %v690 = vmul.f32 %v674, %v689
    %v691 = vsub.f32 1.0, %v690
    %v692 = vmul.f32 %v689, %v691
    %v693 = vadd.f32 %v689, %v692
    %vm694 = vweird.f32 %v674
    %vm695 = vweird.f32 %v689
    %vm696 = vmor %vm694, %vm695
    %v697 = vsel %vm696, %v689, %v693
    %v698 = vand.u32 2147483647, %v674
    %vm699 = vcmp.eq.f32.partialorder %v698, 8.507059e+37
    %v700 = vand.u32 %v674, 2147483648
    %v701 = vor.u32 1.1754944e-38, %v700
    %v702 = vsel %vm699, %v701, %v697
    %v703 = vmul.f32 %v666, %v688
    %v704 = vmul.f32 %v668, %v702
    %707 = vrot.lane.b32.xlu0 %v703, 16
    %v708 = vpop.permute.xlu0 %707
    %709 = vrot.lane.b32.xlu0 %v704, 16
    %v710 = vpop.permute.xlu0 %709
    %vm713 = vcmask 195712
    %714 = vst.msk [vmem:[#allocation9] sm:$0xff] %vm713, %v708
    %715 = vst.msk [vmem:[#allocation9 + $0x8] sm:$0xff] %vm713, %v710
    %v716 = vld [vmem:[#allocation5] sm:$0xff]
    %v717 = vld [vmem:[#allocation5 + $0x8] sm:$0xff]
    %720 = vrot.lane.b32.xlu0 %v716, 112
    %v721 = vpop.permute.xlu0 %720
    %722 = vrot.lane.b32.xlu0 %v717, 112
    %v723 = vpop.permute.xlu0 %722
    %v726 = vadd.f32 %v652, %v721
    %v727 = vadd.f32 %v655, %v723
    %v728 = vmul.f32 %v726, 2.0
    %v729 = vmul.f32 %v727, 2.0
    %v730 = vsel %vm217, %v728, -inf
    %731 = vmax.xlane.f32.xlu0 %v730
    %v732 = vpop.xlane.xlu0 %731
    %v733 = vsel %vm217, %v729, -inf
    %734 = vmax.xlane.f32.xlu0 %v733
    %v735 = vpop.xlane.xlu0 %734
    %v736 = vsub.f32 %v728, %v732
    %v737 = vsub.f32 %v729, %v735
    %v738 = vmul.f32 %v736, 1.442695
    %v739 = vpow.pop %v738
    %v740 = vmul.f32 %v737, 1.442695
    %v741 = vpow.pop %v740
    %v742 = vsel %vm217, %v739, 0.0
    %743 = vadd.xlane.f32.xlu0 %v742
    %v744 = vpop.xlane.xlu0 %743
    %v745 = vsel %vm217, %v741, 0.0
    %746 = vadd.xlane.f32.xlu0 %v745
    %v747 = vpop.xlane.xlu0 %746
    %v748 = vrcp.pop %v744
    %v749 = vmul.f32 %v744, %v748
    %v750 = vsub.f32 1.0, %v749
    %v751 = vmul.f32 %v748, %v750
    %v752 = vadd.f32 %v748, %v751
    %vm753 = vweird.f32 %v744
    %vm754 = vweird.f32 %v748
    %vm755 = vmor %vm753, %vm754
    %v756 = vsel %vm755, %v748, %v752
    %v757 = vand.u32 2147483647, %v744
    %vm758 = vcmp.eq.f32.partialorder %v757, 8.507059e+37
    %v759 = vand.u32 %v744, 2147483648
    %v760 = vor.u32 1.1754944e-38, %v759
    %v761 = vsel %vm758, %v760, %v756
    %v762 = vrcp.pop %v747
    %v763 = vmul.f32 %v747, %v762
    %v764 = vsub.f32 1.0, %v763
    %v765 = vmul.f32 %v762, %v764
    %v766 = vadd.f32 %v762, %v765
    %vm767 = vweird.f32 %v747
    %vm768 = vweird.f32 %v762
    %vm769 = vmor %vm767, %vm768
    %v770 = vsel %vm769, %v762, %v766
    %v771 = vand.u32 2147483647, %v747
    %vm772 = vcmp.eq.f32.partialorder %v771, 8.507059e+37
    %v773 = vand.u32 %v747, 2147483648
    %v774 = vor.u32 1.1754944e-38, %v773
    %v775 = vsel %vm772, %v774, %v770
    %v776 = vmul.f32 %v739, %v761
    %v777 = vmul.f32 %v741, %v775
    %780 = vrot.lane.b32.xlu0 %v776, 16
    %v781 = vpop.permute.xlu0 %780
    %782 = vrot.lane.b32.xlu0 %v777, 16
    %v783 = vpop.permute.xlu0 %782
    %786 = vst.msk [vmem:[#allocation8] sm:$0xff] %vm713, %v781
    %787 = vst.msk [vmem:[#allocation8 + $0x8] sm:$0xff] %vm713, %v783
    %v788 = vperm.slane %v114, 3
    %v789 = vadd.f32 %v109, %v788
    %v790 = vadd.f32 %v112, %v788
    %vm791 = vcmp.gt.f32.partialorder %v789, 0.0
    %vm792 = vcmp.gt.f32.partialorder %v790, 0.0
    %v793 = vmin.f32 %v789, 0.0
    %v794 = vmin.f32 %v790, 0.0
    %v795 = vmul.f32 %v793, 1.442695
    %v796 = vpow.pop %v795
    %v797 = vmul.f32 %v794, 1.442695
    %v798 = vpow.pop %v797
    %v799 = vsub.f32 %v796, 1.0
    %v800 = vsub.f32 %v798, 1.0
    %v801 = vsel %vm791, %v789, %v799
    %v802 = vsel %vm792, %v790, %v800
    %v803 = vld [vmem:[%s4] sm:$0xff]
    %v804 = vld [vmem:[%s4 + $0x8] sm:$0xff]
    %v805 = vld [vmem:[%s4 + $0x10] sm:$0xff]
    %v806 = vld [vmem:[%s4 + $0x18] sm:$0xff]
    %v807 = vld [vmem:[%s5] sm:$0x1]
    %v809 = vperm.slane %v807, 0
    %v812 = vsel %vm138, %v801, 0
    %v815 = vsel %vm138, %v802, 0
    %817 = vmatpush.msra.mxu0 0.0
    %818 = vmatpush.msra.mxu0 0.0
    %819 = vmatpush.msra.mxu0 0.0
    %820 = vmatpush.msra.mxu0 0.0
    %821 = vmatpush.msra.mxu0 0.0
    %822 = vmatpush.msra.mxu0 0.0
    %823 = vmatpush.msra.mxu0 0.0
    %824 = vmatpush.msra.mxu0 0.0
    %825 = vmatpush.msra.mxu0 0.0
    %826 = vmatpush.msra.mxu0 0.0
    %827 = vmatpush.msra.mxu0 0.0
    %828 = vmatpush.msra.mxu0 0.0
    %829 = vmatpush.msra.mxu0 %v806
    %830 = vmatpush.msra.mxu0 %v805
    %831 = vmatpush.msra.mxu0 %v804
    %832 = vmatpush.msra.mxu0 %v803
    %833 = vmatmul.f32.gmra.mxu0 %v812
    %v834 = vpop.f32.mrf.mxu0
    %v835 = vadd.f32 %v809, %v834
    %836 = vmatmul.f32.gmra.mxu0 %v815
    %v837 = vpop.f32.mrf.mxu0
    %v838 = vadd.f32 %v809, %v837
    %839 = vdwg.mxu0
    %vm840 = vcmp.gt.f32.partialorder %v835, 0.0
    %vm841 = vcmp.gt.f32.partialorder %v838, 0.0
    %v842 = vmin.f32 %v835, 0.0
    %v843 = vmin.f32 %v838, 0.0
    %v844 = vmul.f32 %v842, 1.442695
    %v845 = vpow.pop %v844
    %v846 = vmul.f32 %v843, 1.442695
    %v847 = vpow.pop %v846
    %v848 = vsub.f32 %v845, 1.0
    %v849 = vsub.f32 %v847, 1.0
    %v850 = vsel %vm840, %v835, %v848
    %v851 = vsel %vm841, %v838, %v849
    %v852 = vld [vmem:[%s6] sm:$0xff]
    %v853 = vld [vmem:[%s6 + $0x8] sm:$0xff]
    %v854 = vld [vmem:[%s6 + $0x10] sm:$0xff]
    %v855 = vld [vmem:[%s6 + $0x18] sm:$0xff]
    %v856 = vld [vmem:[%s7] sm:$0x1]
    %v858 = vperm.slane %v856, 0
    %v861 = vsel %vm138, %v850, 0
    %v864 = vsel %vm138, %v851, 0
    %866 = vmatpush.msra.mxu0 0.0
    %867 = vmatpush.msra.mxu0 0.0
    %868 = vmatpush.msra.mxu0 0.0
    %869 = vmatpush.msra.mxu0 0.0
    %870 = vmatpush.msra.mxu0 0.0
    %871 = vmatpush.msra.mxu0 0.0
    %872 = vmatpush.msra.mxu0 0.0
    %873 = vmatpush.msra.mxu0 0.0
    %874 = vmatpush.msra.mxu0 0.0
    %875 = vmatpush.msra.mxu0 0.0
    %876 = vmatpush.msra.mxu0 0.0
    %877 = vmatpush.msra.mxu0 0.0
    %878 = vmatpush.msra.mxu0 %v855
    %879 = vmatpush.msra.mxu0 %v854
    %880 = vmatpush.msra.mxu0 %v853
    %881 = vmatpush.msra.mxu0 %v852
    %882 = vmatmul.f32.gmra.mxu0 %v861
    %v883 = vpop.f32.mrf.mxu0
    %v884 = vadd.f32 %v858, %v883
    %885 = vmatmul.f32.gmra.mxu0 %v864
    %v886 = vpop.f32.mrf.mxu0
    %v887 = vadd.f32 %v858, %v886
    %888 = vdwg.mxu0
    %v889 = vsel %vm217, %v884, -inf
    %890 = vmax.xlane.f32.xlu0 %v889
    %v891 = vpop.xlane.xlu0 %890
    %v892 = vsel %vm217, %v887, -inf
    %893 = vmax.xlane.f32.xlu0 %v892
    %v894 = vpop.xlane.xlu0 %893
    %v895 = vsub.f32 %v884, %v891
    %v896 = vsub.f32 %v887, %v894
    %v897 = vmul.f32 %v895, 1.442695
    %v898 = vpow.pop %v897
    %v899 = vmul.f32 %v896, 1.442695
    %v900 = vpow.pop %v899
    %v901 = vsel %vm217, %v898, 0.0
    %902 = vadd.xlane.f32.xlu0 %v901
    %v903 = vpop.xlane.xlu0 %902
    %v904 = vsel %vm217, %v900, 0.0
    %905 = vadd.xlane.f32.xlu0 %v904
    %v906 = vpop.xlane.xlu0 %905
    %v907 = vrcp.pop %v903
    %v908 = vmul.f32 %v903, %v907
    %v909 = vsub.f32 1.0, %v908
    %v910 = vmul.f32 %v907, %v909
    %v911 = vadd.f32 %v907, %v910
    %vm912 = vweird.f32 %v903
    %vm913 = vweird.f32 %v907
    %vm914 = vmor %vm912, %vm913
    %v915 = vsel %vm914, %v907, %v911
    %v916 = vand.u32 2147483647, %v903
    %vm917 = vcmp.eq.f32.partialorder %v916, 8.507059e+37
    %v918 = vand.u32 %v903, 2147483648
    %v919 = vor.u32 1.1754944e-38, %v918
    %v920 = vsel %vm917, %v919, %v915
    %v921 = vrcp.pop %v906
    %v922 = vmul.f32 %v906, %v921
    %v923 = vsub.f32 1.0, %v922
    %v924 = vmul.f32 %v921, %v923
    %v925 = vadd.f32 %v921, %v924
    %vm926 = vweird.f32 %v906
    %vm927 = vweird.f32 %v921
    %vm928 = vmor %vm926, %vm927
    %v929 = vsel %vm928, %v921, %v925
    %v930 = vand.u32 2147483647, %v906
    %vm931 = vcmp.eq.f32.partialorder %v930, 8.507059e+37
    %v932 = vand.u32 %v906, 2147483648
    %v933 = vor.u32 1.1754944e-38, %v932
    %v934 = vsel %vm931, %v933, %v929
    %v935 = vmul.f32 %v898, %v920
    %v936 = vmul.f32 %v900, %v934
    %939 = vrot.lane.b32.xlu0 %v935, 24
    %v940 = vpop.permute.xlu0 %939
    %941 = vrot.lane.b32.xlu0 %v936, 24
    %v942 = vpop.permute.xlu0 %941
    %vm945 = vcmask 261312
    %946 = vst.msk [vmem:[#allocation9] sm:$0xff] %vm945, %v940
    %947 = vst.msk [vmem:[#allocation9 + $0x8] sm:$0xff] %vm945, %v942
    %v948 = vld [vmem:[#allocation5] sm:$0xff]
    %v949 = vld [vmem:[#allocation5 + $0x8] sm:$0xff]
    %952 = vrot.lane.b32.xlu0 %v948, 104
    %v953 = vpop.permute.xlu0 %952
    %954 = vrot.lane.b32.xlu0 %v949, 104
    %v955 = vpop.permute.xlu0 %954
    %v958 = vadd.f32 %v884, %v953
    %v959 = vadd.f32 %v887, %v955
    %v960 = vmul.f32 %v958, 2.0
    %v961 = vmul.f32 %v959, 2.0
    %v962 = vsel %vm217, %v960, -inf
    %963 = vmax.xlane.f32.xlu0 %v962
    %v964 = vpop.xlane.xlu0 %963
    %v965 = vsel %vm217, %v961, -inf
    %966 = vmax.xlane.f32.xlu0 %v965
    %v967 = vpop.xlane.xlu0 %966
    %v968 = vsub.f32 %v960, %v964
    %v969 = vsub.f32 %v961, %v967
    %v970 = vmul.f32 %v968, 1.442695
    %v971 = vpow.pop %v970
    %v972 = vmul.f32 %v969, 1.442695
    %v973 = vpow.pop %v972
    %v974 = vsel %vm217, %v971, 0.0
    %975 = vadd.xlane.f32.xlu0 %v974
    %v976 = vpop.xlane.xlu0 %975
    %v977 = vsel %vm217, %v973, 0.0
    %978 = vadd.xlane.f32.xlu0 %v977
    %v979 = vpop.xlane.xlu0 %978
    %v980 = vrcp.pop %v976
    %v981 = vmul.f32 %v976, %v980
    %v982 = vsub.f32 1.0, %v981
    %v983 = vmul.f32 %v980, %v982
    %v984 = vadd.f32 %v980, %v983
    %vm985 = vweird.f32 %v976
    %vm986 = vweird.f32 %v980
    %vm987 = vmor %vm985, %vm986
    %v988 = vsel %vm987, %v980, %v984
    %v989 = vand.u32 2147483647, %v976
    %vm990 = vcmp.eq.f32.partialorder %v989, 8.507059e+37
    %v991 = vand.u32 %v976, 2147483648
    %v992 = vor.u32 1.1754944e-38, %v991
    %v993 = vsel %vm990, %v992, %v988
    %v994 = vrcp.pop %v979
    %v995 = vmul.f32 %v979, %v994
    %v996 = vsub.f32 1.0, %v995
    %v997 = vmul.f32 %v994, %v996
    %v998 = vadd.f32 %v994, %v997
    %vm999 = vweird.f32 %v979
    %vm1000 = vweird.f32 %v994
    %vm1001 = vmor %vm999, %vm1000
    %v1002 = vsel %vm1001, %v994, %v998
    %v1003 = vand.u32 2147483647, %v979
    %vm1004 = vcmp.eq.f32.partialorder %v1003, 8.507059e+37
    %v1005 = vand.u32 %v979, 2147483648
    %v1006 = vor.u32 1.1754944e-38, %v1005
    %v1007 = vsel %vm1004, %v1006, %v1002
    %v1008 = vmul.f32 %v971, %v993
    %v1009 = vmul.f32 %v973, %v1007
    %1012 = vrot.lane.b32.xlu0 %v1008, 24
    %v1013 = vpop.permute.xlu0 %1012
    %1014 = vrot.lane.b32.xlu0 %v1009, 24
    %v1015 = vpop.permute.xlu0 %1014
    %1018 = vst.msk [vmem:[#allocation8] sm:$0xff] %vm945, %v1013
    %1019 = vst.msk [vmem:[#allocation8 + $0x8] sm:$0xff] %vm945, %v1015
    // Predicated region
    $region46: #{tpu_custom_call.1} parent=1 // pred_check
      _
    $region47: #{tpu_custom_call.1} parent=1 // pred_check_branch
      %1021 = sbr.rel (0) target = $region49
    $region48: #{tpu_custom_call.1} parent=1 // pred_region
      %1023 = vsyncadd [#allocation4], 0
      %s1024 = sshll.u32 [#allocation8], 4
      %s1025 = int_to_ptr.vmem [resolvable:$true] %s1024
      %s1026 = sshll.u32 %s8, 4
      %s1027 = int_to_ptr.hbm [resolvable:$true] %s1026
      %1032 = dma.vmem_to_hbm [thread:$0]  %s1025, 256, %s1027, [#allocation4], 128, 128, 8
    $region49: #{tpu_custom_call.1} parent=1 // pred_fallthru
      _
    // Predicated region
    $region50: #{tpu_custom_call.1} parent=1 // pred_check
      _
    $region51: #{tpu_custom_call.1} parent=1 // pred_check_branch
      %1034 = sbr.rel (0) target = $region53
    $region52: #{tpu_custom_call.1} parent=1 // pred_region
      %1036 = vsyncadd [#allocation10], 0
      %s1037 = sshll.u32 [#allocation9], 4
      %s1038 = int_to_ptr.vmem [resolvable:$true] %s1037
      %s1039 = sshll.u32 %s9, 4
      %s1040 = int_to_ptr.hbm [resolvable:$true] %s1039
      %1045 = dma.vmem_to_hbm [thread:$0]  %s1038, 256, %s1040, [#allocation10], 128, 128, 8
    $region53: #{tpu_custom_call.1} parent=1 // pred_fallthru
      _
    // Predicated region
    $region54: #{tpu_custom_call.1} parent=1 // pred_check
      _
    $region55: #{tpu_custom_call.1} parent=1 // pred_check_branch
      %1047 = sbr.rel (0) target = $region57
    $region56: #{tpu_custom_call.1} parent=1 // pred_region
      %1049 = dma.done [#allocation4], 256
    $region57: #{tpu_custom_call.1} parent=1 // pred_fallthru
      _
    // Predicated region
    $region58: #{tpu_custom_call.1} parent=1 // pred_check
      _
    $region59: #{tpu_custom_call.1} parent=1 // pred_check_branch
      %1051 = sbr.rel (0) target = $region61
    $region60: #{tpu_custom_call.1} parent=1 // pred_region
      %1053 = dma.done [#allocation10], 256
    $region61: #{tpu_custom_call.1} parent=1 // pred_fallthru
      _
    %1054 = vsyncpa [#allocation3], 1
    %1055 = vsyncpa [#allocation6], 1
    %1056 = vsyncpa [#allocation4], 1
    %1057 = vsyncpa [#allocation10], 1

</llo_original>
